<compile_context>
chip_gen: v7x
topology: tpu7x:2x2x1
jax: 0.10.0
libtpu: 0.0.40
codegen_flags: <defaults>
</compile_context>

<pallas_src>
import functools

import jax
import jax.numpy as jnp
from jax.experimental import pallas as pl
from jax.experimental.pallas import tpu as pltpu


# -----------------------------------------------------------------------------
# Kernel
# -----------------------------------------------------------------------------
def _layernorm(x, gamma, beta, eps=1e-5):
    # PyTorch nn.LayerNorm: biased variance, eps=1e-5.  All f32.
    mu = jnp.mean(x, axis=-1, keepdims=True)
    var = jnp.mean((x - mu) ** 2, axis=-1, keepdims=True)
    return (x - mu) * jax.lax.rsqrt(var + eps) * gamma + beta


def transformer_kernel(heads, depth, b, t,
                       x_ref, mask_ref,
                       wqkv_ref, wu_ref, bu_ref,
                       g1_ref, be1_ref,
                       w1_ref, bf1_ref, w2_ref, bf2_ref,
                       g2_ref, be2_ref,
                       pw_ref, pb_ref,
                       o_ref):
    """Full Transformer forward: depth blocks + classifier head, one call."""
    bt, k = x_ref.shape                     # bt = b * t, k = embed_dim

    xf = x_ref[...]                         # (bt, k) f32 activation slab
    maskf = mask_ref[...]                   # (heads*t, k) f32 0/1 head-block mask
    mask16 = maskf.astype(jnp.bfloat16)     # hoisted: reused every layer

    for d in range(depth):                  # static, small (depth=2)
        # ---- fused Q/K/V projection: one (bt, k) @ (k, 3k) matmul -----------
        # (Q columns of wqkv are pre-scaled by 1/sqrt(k) at init.)
        qkv = jnp.dot(xf.astype(jnp.bfloat16), wqkv_ref[d],
                      preferred_element_type=jnp.float32)          # (bt, 3k)
        q = qkv[:, 0 * k:1 * k].reshape(b, t, k).astype(jnp.bfloat16)
        kf = qkv[:, 1 * k:2 * k].reshape(b, t, k)                   # f32
        vf = qkv[:, 2 * k:3 * k].reshape(b, t, k)                   # f32

        # ---- head-blocked K/V tiles: (b, heads*t, k) -------------------------
        # Row block h holds K/V again; the mask keeps only head h's columns, so
        # a single batched einsum computes every head's scores / context.
        km = (jnp.concatenate([kf] * heads, axis=1) * maskf).astype(jnp.bfloat16)
        vm = (jnp.concatenate([vf] * heads, axis=1) * maskf).astype(jnp.bfloat16)

        # ---- all heads' scores in one batched einsum: (b, t, heads*t) --------
        sc = jnp.einsum('bqc,bjc->bqj', q, km,
                        preferred_element_type=jnp.float32)
        # Global row max is constant within each head block -> exact per-head
        # softmax stabilizer (no lane-splitting reshape needed).
        m = jnp.max(sc, axis=-1, keepdims=True)
        e = jnp.exp(sc - m)                                          # f32
        e16 = e.astype(jnp.bfloat16)

        # ---- unnormalized context, already head-major (b, t, k) --------------
        ctx = jnp.einsum('bqj,bjc->bqc', e16, vm,
                         preferred_element_type=jnp.float32).reshape(bt, k)
        # Per-head denominator broadcast onto that head's output columns.
        den = jnp.dot(e16.reshape(bt, heads * t), mask16,
                      preferred_element_type=jnp.float32)            # (bt, k)
        att = ctx * pl.reciprocal(jnp.maximum(den, 1e-30), approx=True)

        # ---- unify heads (biased) + residual + norm1 -------------------------
        att = jnp.dot(att.astype(jnp.bfloat16), wu_ref[d],
                      preferred_element_type=jnp.float32) + bu_ref[d]
        x1 = _layernorm(att + xf, g1_ref[d], be1_ref[d])

        # ---- feed-forward: Linear(k, 2k) -> ReLU -> Linear(2k, k) ------------
        h1 = jnp.dot(x1.astype(jnp.bfloat16), w1_ref[d],
                     preferred_element_type=jnp.float32) + bf1_ref[d]
        h1 = jnp.maximum(h1, 0.0)
        ff = jnp.dot(h1.astype(jnp.bfloat16), w2_ref[d],
                     preferred_element_type=jnp.float32) + bf2_ref[d]

        # ---- residual + norm2 -------------------------------------------------
        xf = _layernorm(ff + x1, g2_ref[d], be2_ref[d])

    # ---- classifier head: mean over seq, linear, log_softmax ----------------
    pooled = jnp.mean(xf.reshape(b, t, k), axis=1)                   # (b, k)
    # probs_w/probs_b are padded to a lane-dense 128-class width; padded bias
    # entries are -1e30 so the log_softmax normalizer is unchanged.
    logits = jnp.dot(pooled.astype(jnp.bfloat16), pw_ref[...],
                     preferred_element_type=jnp.float32) + pb_ref[...]
    mm = jnp.max(logits, axis=-1, keepdims=True)
    sh = logits - mm
    lse = jnp.log(jnp.sum(jnp.exp(sh), axis=-1, keepdims=True))
    o_ref[...] = (sh - lse).astype(o_ref.dtype)


# -----------------------------------------------------------------------------
# Wrapper
# -----------------------------------------------------------------------------
def transformer_forward(token_ids, params, heads, num_classes):
    """Embeddings in plain JAX (data-dependent gather), everything else fused."""
    b, t = token_ids.shape
    tokens = jnp.take(params["token_emb"], token_ids, axis=0)        # (b, t, k)
    positions = params["pos_emb"][:t][None, :, :]                    # (1, t, k)
    # Flatten to (b*t, k) here (free layout work in XLA), kernel stays flat.
    x = (tokens + positions).astype(jnp.float32).reshape(b * t, -1)
    k = x.shape[-1]
    s = k // heads
    depth = params["wqkv"].shape[0]
    nclass_pad = params["probs_w"].shape[-1]

    # 0/1 head-block mask: mask[j, c] = 1 iff row-block j//t == column-head c//s.
    row_head = jnp.arange(heads * t, dtype=jnp.int32) // t
    col_head = jnp.arange(k, dtype=jnp.int32) // s
    mask = (row_head[:, None] == col_head[None, :]).astype(jnp.float32)

    kernel = functools.partial(transformer_kernel, heads, depth, b, t)
    vspec = pl.BlockSpec(memory_space=pltpu.MemorySpace.VMEM)

    inputs = (x, mask,
              params["wqkv"], params["wu"], params["bu"],
              params["g1"], params["be1"],
              params["w1"], params["bf1"], params["w2"], params["bf2"],
              params["g2"], params["be2"],
              params["probs_w"], params["probs_b"])

    out = pl.pallas_call(
        kernel,
        out_shape=jax.ShapeDtypeStruct((b, nclass_pad), jnp.float32),
        in_specs=[vspec] * len(inputs),
        out_specs=vspec,
        # No grid: whole problem (<1 MiB) is VMEM-resident, single program.
    )(*inputs)
    return out[:, :num_classes]


# -----------------------------------------------------------------------------
# Deterministic parameter init (shapes follow the PyTorch __init__),
# stored pre-transposed (in_features, out_features), stacked over depth.
# -----------------------------------------------------------------------------
def _linear_init(key, fan_in, fan_out, bias=True):
    bound = 1.0 / (float(fan_in) ** 0.5)
    k1, k2 = jax.random.split(key)
    w = jax.random.uniform(k1, (fan_in, fan_out), jnp.float32, -bound, bound)
    if not bias:
        return w, None
    bvec = jax.random.uniform(k2, (1, fan_out), jnp.float32, -bound, bound)
    return w, bvec


def init_params(key, embed_dim, heads, depth, seq_length, num_tokens, num_classes):
    keys = jax.random.split(key, 3 + depth)
    token_emb = jax.random.normal(keys[0], (num_tokens, embed_dim), jnp.float32)
    pos_emb = jax.random.normal(keys[1], (seq_length, embed_dim), jnp.float32)

    scale = 1.0 / (float(embed_dim) ** 0.5)   # folded into the Q projection

    wqkv_l, wu_l, bu_l, g1_l, be1_l = [], [], [], [], []
    w1_l, bf1_l, w2_l, bf2_l, g2_l, be2_l = [], [], [], [], [], []
    for d in range(depth):
        bk = jax.random.split(keys[2 + d], 6)
        wq, _ = _linear_init(bk[0], embed_dim, embed_dim, bias=False)
        wk, _ = _linear_init(bk[1], embed_dim, embed_dim, bias=False)
        wv, _ = _linear_init(bk[2], embed_dim, embed_dim, bias=False)
        wu, bu = _linear_init(bk[3], embed_dim, embed_dim, bias=True)
        w1, bf1 = _linear_init(bk[4], embed_dim, 2 * embed_dim, bias=True)
        w2, bf2 = _linear_init(bk[5], 2 * embed_dim, embed_dim, bias=True)
        wqkv_l.append(jnp.concatenate([wq * scale, wk, wv], axis=1))  # (k, 3k)
        wu_l.append(wu); bu_l.append(bu)
        g1_l.append(jnp.ones((1, embed_dim), jnp.float32))
        be1_l.append(jnp.zeros((1, embed_dim), jnp.float32))
        w1_l.append(w1); bf1_l.append(bf1)
        w2_l.append(w2); bf2_l.append(bf2)
        g2_l.append(jnp.ones((1, embed_dim), jnp.float32))
        be2_l.append(jnp.zeros((1, embed_dim), jnp.float32))

    pw, pb = _linear_init(keys[2 + depth], embed_dim, num_classes, bias=True)
    # Lane-dense classifier: zero-pad weights, -1e30-pad bias (keeps log_softmax
    # normalizer identical for the real classes).
    nclass_pad = ((num_classes + 127) // 128) * 128
    pw_pad = jnp.zeros((embed_dim, nclass_pad), jnp.float32).at[:, :num_classes].set(pw)
    pb_pad = jnp.full((1, nclass_pad), -1e30, jnp.float32).at[:, :num_classes].set(pb)

    # Matmul weights in bf16 (f32 accumulation in-kernel); biases/norm params f32.
    return {
        "token_emb": token_emb,
        "pos_emb": pos_emb,
        "wqkv": jnp.stack(wqkv_l).astype(jnp.bfloat16),   # (depth, k, 3k)
        "wu":   jnp.stack(wu_l).astype(jnp.bfloat16),     # (depth, k, k)
        "bu":   jnp.stack(bu_l),                          # (depth, 1, k)
        "g1":   jnp.stack(g1_l),  "be1": jnp.stack(be1_l),
        "w1":   jnp.stack(w1_l).astype(jnp.bfloat16),     # (depth, k, 2k)
        "bf1":  jnp.stack(bf1_l),                         # (depth, 1, 2k)
        "w2":   jnp.stack(w2_l).astype(jnp.bfloat16),     # (depth, 2k, k)
        "bf2":  jnp.stack(bf2_l),                         # (depth, 1, k)
        "g2":   jnp.stack(g2_l),  "be2": jnp.stack(be2_l),
        "probs_w": pw_pad.astype(jnp.bfloat16),           # (k, 128)
        "probs_b": pb_pad,                                # (1, 128)
    }


# -----------------------------------------------------------------------------
if __name__ == "__main__":
    EMBED_DIM = 32
    HEADS = 4
    DEPTH = 2
    SEQ_LEN = 8
    NUM_TOKENS = 50
    NUM_CLASSES = 10
    BATCH = 2

    key = jax.random.PRNGKey(0)
    k_param, k_data = jax.random.split(key)
    params = init_params(k_param, EMBED_DIM, HEADS, DEPTH, SEQ_LEN,
                         NUM_TOKENS, NUM_CLASSES)
    token_ids = jax.random.randint(k_data, (BATCH, SEQ_LEN), 0, NUM_TOKENS,
                                   dtype=jnp.int32)

    out = transformer_forward(token_ids, params, HEADS, NUM_CLASSES)
    out = jax.block_until_ready(out)
    assert out.shape == (BATCH, NUM_CLASSES)
    assert bool(jnp.all(jnp.isfinite(out)))
    # log-softmax rows should sum (in prob space) to ~1
    assert bool(jnp.all(jnp.abs(jnp.sum(jnp.exp(out), axis=-1) - 1.0) < 1e-2))
    print("KERNEL_OK")
</pallas_src>

<mosaic_0001>
module attributes {stable_mosaic.version = 11 : i64} {
  func.func @transformer_kernel(%arg0: memref<16x32xf32, #tpu.memory_space<vmem>>, %arg1: memref<32x32xf32, #tpu.memory_space<vmem>>, %arg2: memref<2x32x96xbf16, #tpu.memory_space<vmem>>, %arg3: memref<2x32x32xbf16, #tpu.memory_space<vmem>>, %arg4: memref<2x1x32xf32, #tpu.memory_space<vmem>>, %arg5: memref<2x1x32xf32, #tpu.memory_space<vmem>>, %arg6: memref<2x1x32xf32, #tpu.memory_space<vmem>>, %arg7: memref<2x32x64xbf16, #tpu.memory_space<vmem>>, %arg8: memref<2x1x64xf32, #tpu.memory_space<vmem>>, %arg9: memref<2x64x32xbf16, #tpu.memory_space<vmem>>, %arg10: memref<2x1x32xf32, #tpu.memory_space<vmem>>, %arg11: memref<2x1x32xf32, #tpu.memory_space<vmem>>, %arg12: memref<2x1x32xf32, #tpu.memory_space<vmem>>, %arg13: memref<32x128xbf16, #tpu.memory_space<vmem>>, %arg14: memref<1x128xf32, #tpu.memory_space<vmem>>, %arg15: memref<2x128xf32, #tpu.memory_space<vmem>>) attributes {dimension_semantics = [], scalar_prefetch = 0 : i64, scratch_operands = 0 : i64, tpu.core_type = #tpu.core_type<tc>} {
    %c0 = arith.constant 0 : index
    %c0_0 = arith.constant 0 : index
    %0 = vector.load %arg0[%c0, %c0_0] : memref<16x32xf32, #tpu.memory_space<vmem>>, vector<16x32xf32>
    %c0_1 = arith.constant 0 : index
    %c0_2 = arith.constant 0 : index
    %1 = vector.load %arg1[%c0_1, %c0_2] : memref<32x32xf32, #tpu.memory_space<vmem>>, vector<32x32xf32>
    %2 = arith.truncf %1 : vector<32x32xf32> to vector<32x32xbf16>
    %3 = arith.truncf %0 : vector<16x32xf32> to vector<16x32xbf16>
    %c0_3 = arith.constant 0 : index
    %c0_4 = arith.constant 0 : index
    %c0_5 = arith.constant 0 : index
    %4 = vector.load %arg2[%c0_3, %c0_4, %c0_5] : memref<2x32x96xbf16, #tpu.memory_space<vmem>>, vector<1x32x96xbf16>
    %5 = vector.shape_cast %4 : vector<1x32x96xbf16> to vector<32x96xbf16>
    %cst = arith.constant dense<0.000000e+00> : vector<16x96xf32>
    %6 = tpu.matmul %3, %5, %cst {dimension_numbers = #tpu.dot_dimension_numbers<[1], [0], [0], [1], [0, 0, 1, 1], [], []>} : vector<16x32xbf16>, vector<32x96xbf16>, vector<16x96xf32> -> vector<16x96xf32>
    %7 = vector.extract_strided_slice %6 {offsets = [0, 0], sizes = [16, 32], strides = [1, 1]} : vector<16x96xf32> to vector<16x32xf32>
    %8 = vector.shape_cast %7 : vector<16x32xf32> to vector<2x8x32xf32>
    %9 = arith.truncf %8 : vector<2x8x32xf32> to vector<2x8x32xbf16>
    %10 = vector.extract_strided_slice %6 {offsets = [0, 32], sizes = [16, 32], strides = [1, 1]} : vector<16x96xf32> to vector<16x32xf32>
    %11 = vector.shape_cast %10 : vector<16x32xf32> to vector<2x8x32xf32>
    %12 = vector.extract_strided_slice %6 {offsets = [0, 64], sizes = [16, 32], strides = [1, 1]} : vector<16x96xf32> to vector<16x32xf32>
    %13 = vector.shape_cast %12 : vector<16x32xf32> to vector<2x8x32xf32>
    %14 = tpu.concatenate %11, %11, %11, %11 in 1 : vector<2x8x32xf32>, vector<2x8x32xf32>, vector<2x8x32xf32>, vector<2x8x32xf32> -> vector<2x32x32xf32>
    %15 = vector.shape_cast %1 : vector<32x32xf32> to vector<1x32x32xf32>
    %16 = vector.broadcast %15 : vector<1x32x32xf32> to vector<2x32x32xf32>
    %17 = arith.mulf %14, %16 : vector<2x32x32xf32>
    %18 = arith.truncf %17 : vector<2x32x32xf32> to vector<2x32x32xbf16>
    %19 = tpu.concatenate %13, %13, %13, %13 in 1 : vector<2x8x32xf32>, vector<2x8x32xf32>, vector<2x8x32xf32>, vector<2x8x32xf32> -> vector<2x32x32xf32>
    %20 = vector.shape_cast %1 : vector<32x32xf32> to vector<1x32x32xf32>
    %21 = vector.broadcast %20 : vector<1x32x32xf32> to vector<2x32x32xf32>
    %22 = arith.mulf %19, %21 : vector<2x32x32xf32>
    %23 = arith.truncf %22 : vector<2x32x32xf32> to vector<2x32x32xbf16>
    "tpu.trace_start"() <{level = 10 : i32, message = "bqc,bjc->bqj"}> : () -> ()
    %cst_6 = arith.constant dense<0.000000e+00> : vector<2x8x32xf32>
    %24 = tpu.matmul %9, %18, %cst_6 {dimension_numbers = #tpu.dot_dimension_numbers<[2], [2], [1], [1], [0, 0, 0, 1, 1, 1], [0], [0]>} : vector<2x8x32xbf16>, vector<2x32x32xbf16>, vector<2x8x32xf32> -> vector<2x8x32xf32>
    "tpu.trace_stop"() : () -> ()
    %cst_7 = arith.constant dense<0xFF800000> : vector<2x8xf32>
    %25 = vector.multi_reduction <maximumf>, %24, %cst_7 [2] : vector<2x8x32xf32> to vector<2x8xf32>
    %26 = vector.shape_cast %25 : vector<2x8xf32> to vector<2x8x1xf32>
    %27 = vector.broadcast %26 : vector<2x8x1xf32> to vector<2x8x32xf32>
    %28 = arith.subf %24, %27 : vector<2x8x32xf32>
    %29 = math.exp %28 : vector<2x8x32xf32>
    %30 = arith.truncf %29 : vector<2x8x32xf32> to vector<2x8x32xbf16>
    "tpu.trace_start"() <{level = 10 : i32, message = "bqj,bjc->bqc"}> : () -> ()
    %cst_8 = arith.constant dense<0.000000e+00> : vector<2x8x32xf32>
    %31 = tpu.matmul %30, %23, %cst_8 {dimension_numbers = #tpu.dot_dimension_numbers<[2], [1], [1], [2], [0, 0, 0, 1, 1, 2], [0], [0]>} : vector<2x8x32xbf16>, vector<2x32x32xbf16>, vector<2x8x32xf32> -> vector<2x8x32xf32>
    "tpu.trace_stop"() : () -> ()
    %32 = vector.shape_cast %31 : vector<2x8x32xf32> to vector<16x32xf32>
    %33 = vector.shape_cast %30 : vector<2x8x32xbf16> to vector<16x32xbf16>
    %cst_9 = arith.constant dense<0.000000e+00> : vector<16x32xf32>
    %34 = tpu.matmul %33, %2, %cst_9 {dimension_numbers = #tpu.dot_dimension_numbers<[1], [0], [0], [1], [0, 0, 1, 1], [], []>} : vector<16x32xbf16>, vector<32x32xbf16>, vector<16x32xf32> -> vector<16x32xf32>
    %cst_10 = arith.constant 1.000000e-30 : f32
    %35 = vector.broadcast %cst_10 : f32 to vector<16x32xf32>
    %36 = arith.maximumf %34, %35 : vector<16x32xf32>
    %37 = tpu.reciprocal %36 {approx = true} : vector<16x32xf32> -> vector<16x32xf32>
    %38 = arith.mulf %32, %37 : vector<16x32xf32>
    %39 = arith.truncf %38 : vector<16x32xf32> to vector<16x32xbf16>
    %c0_11 = arith.constant 0 : index
    %c0_12 = arith.constant 0 : index
    %c0_13 = arith.constant 0 : index
    %40 = vector.load %arg3[%c0_11, %c0_12, %c0_13] : memref<2x32x32xbf16, #tpu.memory_space<vmem>>, vector<1x32x32xbf16>
    %41 = vector.shape_cast %40 : vector<1x32x32xbf16> to vector<32x32xbf16>
    %cst_14 = arith.constant dense<0.000000e+00> : vector<16x32xf32>
    %42 = tpu.matmul %39, %41, %cst_14 {dimension_numbers = #tpu.dot_dimension_numbers<[1], [0], [0], [1], [0, 0, 1, 1], [], []>} : vector<16x32xbf16>, vector<32x32xbf16>, vector<16x32xf32> -> vector<16x32xf32>
    %c0_15 = arith.constant 0 : index
    %c0_16 = arith.constant 0 : index
    %c0_17 = arith.constant 0 : index
    %43 = vector.load %arg4[%c0_15, %c0_16, %c0_17] : memref<2x1x32xf32, #tpu.memory_space<vmem>>, vector<1x1x32xf32>
    %44 = vector.shape_cast %43 : vector<1x1x32xf32> to vector<1x32xf32>
    %45 = vector.broadcast %44 : vector<1x32xf32> to vector<16x32xf32>
    %46 = arith.addf %42, %45 : vector<16x32xf32>
    %47 = arith.addf %46, %0 : vector<16x32xf32>
    %c0_18 = arith.constant 0 : index
    %c0_19 = arith.constant 0 : index
    %c0_20 = arith.constant 0 : index
    %48 = vector.load %arg5[%c0_18, %c0_19, %c0_20] : memref<2x1x32xf32, #tpu.memory_space<vmem>>, vector<1x1x32xf32>
    %49 = vector.shape_cast %48 : vector<1x1x32xf32> to vector<1x32xf32>
    %c0_21 = arith.constant 0 : index
    %c0_22 = arith.constant 0 : index
    %c0_23 = arith.constant 0 : index
    %50 = vector.load %arg6[%c0_21, %c0_22, %c0_23] : memref<2x1x32xf32, #tpu.memory_space<vmem>>, vector<1x1x32xf32>
    %51 = vector.shape_cast %50 : vector<1x1x32xf32> to vector<1x32xf32>
    %cst_24 = arith.constant dense<0.000000e+00> : vector<16xf32>
    %52 = vector.multi_reduction <add>, %47, %cst_24 [1] : vector<16x32xf32> to vector<16xf32>
    %53 = vector.shape_cast %52 : vector<16xf32> to vector<16x1xf32>
    %cst_25 = arith.constant 3.200000e+01 : f32
    %54 = vector.broadcast %cst_25 : f32 to vector<16x1xf32>
    %55 = arith.divf %53, %54 : vector<16x1xf32>
    %56 = vector.broadcast %55 : vector<16x1xf32> to vector<16x32xf32>
    %57 = arith.subf %47, %56 : vector<16x32xf32>
    %58 = arith.mulf %57, %57 : vector<16x32xf32>
    %cst_26 = arith.constant dense<0.000000e+00> : vector<16xf32>
    %59 = vector.multi_reduction <add>, %58, %cst_26 [1] : vector<16x32xf32> to vector<16xf32>
    %60 = vector.shape_cast %59 : vector<16xf32> to vector<16x1xf32>
    %cst_27 = arith.constant 3.200000e+01 : f32
    %61 = vector.broadcast %cst_27 : f32 to vector<16x1xf32>
    %62 = arith.divf %60, %61 : vector<16x1xf32>
    %63 = vector.broadcast %55 : vector<16x1xf32> to vector<16x32xf32>
    %64 = arith.subf %47, %63 : vector<16x32xf32>
    %cst_28 = arith.constant 9.99999974E-6 : f32
    %65 = vector.broadcast %cst_28 : f32 to vector<16x1xf32>
    %66 = arith.addf %62, %65 : vector<16x1xf32>
    %67 = math.rsqrt %66 : vector<16x1xf32>
    %68 = vector.broadcast %67 : vector<16x1xf32> to vector<16x32xf32>
    %69 = arith.mulf %64, %68 : vector<16x32xf32>
    %70 = vector.broadcast %49 : vector<1x32xf32> to vector<16x32xf32>
    %71 = arith.mulf %69, %70 : vector<16x32xf32>
    %72 = vector.broadcast %51 : vector<1x32xf32> to vector<16x32xf32>
    %73 = arith.addf %71, %72 : vector<16x32xf32>
    %74 = arith.truncf %73 : vector<16x32xf32> to vector<16x32xbf16>
    %c0_29 = arith.constant 0 : index
    %c0_30 = arith.constant 0 : index
    %c0_31 = arith.constant 0 : index
    %75 = vector.load %arg7[%c0_29, %c0_30, %c0_31] : memref<2x32x64xbf16, #tpu.memory_space<vmem>>, vector<1x32x64xbf16>
    %76 = vector.shape_cast %75 : vector<1x32x64xbf16> to vector<32x64xbf16>
    %cst_32 = arith.constant dense<0.000000e+00> : vector<16x64xf32>
    %77 = tpu.matmul %74, %76, %cst_32 {dimension_numbers = #tpu.dot_dimension_numbers<[1], [0], [0], [1], [0, 0, 1, 1], [], []>} : vector<16x32xbf16>, vector<32x64xbf16>, vector<16x64xf32> -> vector<16x64xf32>
    %c0_33 = arith.constant 0 : index
    %c0_34 = arith.constant 0 : index
    %c0_35 = arith.constant 0 : index
    %78 = vector.load %arg8[%c0_33, %c0_34, %c0_35] : memref<2x1x64xf32, #tpu.memory_space<vmem>>, vector<1x1x64xf32>
    %79 = vector.shape_cast %78 : vector<1x1x64xf32> to vector<1x64xf32>
    %80 = vector.broadcast %79 : vector<1x64xf32> to vector<16x64xf32>
    %81 = arith.addf %77, %80 : vector<16x64xf32>
    %cst_36 = arith.constant 0.000000e+00 : f32
    %82 = vector.broadcast %cst_36 : f32 to vector<16x64xf32>
    %83 = arith.maximumf %81, %82 : vector<16x64xf32>
    %84 = arith.truncf %83 : vector<16x64xf32> to vector<16x64xbf16>
    %c0_37 = arith.constant 0 : index
    %c0_38 = arith.constant 0 : index
    %c0_39 = arith.constant 0 : index
    %85 = vector.load %arg9[%c0_37, %c0_38, %c0_39] : memref<2x64x32xbf16, #tpu.memory_space<vmem>>, vector<1x64x32xbf16>
    %86 = vector.shape_cast %85 : vector<1x64x32xbf16> to vector<64x32xbf16>
    %cst_40 = arith.constant dense<0.000000e+00> : vector<16x32xf32>
    %87 = tpu.matmul %84, %86, %cst_40 {dimension_numbers = #tpu.dot_dimension_numbers<[1], [0], [0], [1], [0, 0, 1, 1], [], []>} : vector<16x64xbf16>, vector<64x32xbf16>, vector<16x32xf32> -> vector<16x32xf32>
    %c0_41 = arith.constant 0 : index
    %c0_42 = arith.constant 0 : index
    %c0_43 = arith.constant 0 : index
    %88 = vector.load %arg10[%c0_41, %c0_42, %c0_43] : memref<2x1x32xf32, #tpu.memory_space<vmem>>, vector<1x1x32xf32>
    %89 = vector.shape_cast %88 : vector<1x1x32xf32> to vector<1x32xf32>
    %90 = vector.broadcast %89 : vector<1x32xf32> to vector<16x32xf32>
    %91 = arith.addf %87, %90 : vector<16x32xf32>
    %92 = arith.addf %91, %73 : vector<16x32xf32>
    %c0_44 = arith.constant 0 : index
    %c0_45 = arith.constant 0 : index
    %c0_46 = arith.constant 0 : index
    %93 = vector.load %arg11[%c0_44, %c0_45, %c0_46] : memref<2x1x32xf32, #tpu.memory_space<vmem>>, vector<1x1x32xf32>
    %94 = vector.shape_cast %93 : vector<1x1x32xf32> to vector<1x32xf32>
    %c0_47 = arith.constant 0 : index
    %c0_48 = arith.constant 0 : index
    %c0_49 = arith.constant 0 : index
    %95 = vector.load %arg12[%c0_47, %c0_48, %c0_49] : memref<2x1x32xf32, #tpu.memory_space<vmem>>, vector<1x1x32xf32>
    %96 = vector.shape_cast %95 : vector<1x1x32xf32> to vector<1x32xf32>
    %cst_50 = arith.constant dense<0.000000e+00> : vector<16xf32>
    %97 = vector.multi_reduction <add>, %92, %cst_50 [1] : vector<16x32xf32> to vector<16xf32>
    %98 = vector.shape_cast %97 : vector<16xf32> to vector<16x1xf32>
    %cst_51 = arith.constant 3.200000e+01 : f32
    %99 = vector.broadcast %cst_51 : f32 to vector<16x1xf32>
    %100 = arith.divf %98, %99 : vector<16x1xf32>
    %101 = vector.broadcast %100 : vector<16x1xf32> to vector<16x32xf32>
    %102 = arith.subf %92, %101 : vector<16x32xf32>
    %103 = arith.mulf %102, %102 : vector<16x32xf32>
    %cst_52 = arith.constant dense<0.000000e+00> : vector<16xf32>
    %104 = vector.multi_reduction <add>, %103, %cst_52 [1] : vector<16x32xf32> to vector<16xf32>
    %105 = vector.shape_cast %104 : vector<16xf32> to vector<16x1xf32>
    %cst_53 = arith.constant 3.200000e+01 : f32
    %106 = vector.broadcast %cst_53 : f32 to vector<16x1xf32>
    %107 = arith.divf %105, %106 : vector<16x1xf32>
    %108 = vector.broadcast %100 : vector<16x1xf32> to vector<16x32xf32>
    %109 = arith.subf %92, %108 : vector<16x32xf32>
    %cst_54 = arith.constant 9.99999974E-6 : f32
    %110 = vector.broadcast %cst_54 : f32 to vector<16x1xf32>
    %111 = arith.addf %107, %110 : vector<16x1xf32>
    %112 = math.rsqrt %111 : vector<16x1xf32>
    %113 = vector.broadcast %112 : vector<16x1xf32> to vector<16x32xf32>
    %114 = arith.mulf %109, %113 : vector<16x32xf32>
    %115 = vector.broadcast %94 : vector<1x32xf32> to vector<16x32xf32>
    %116 = arith.mulf %114, %115 : vector<16x32xf32>
    %117 = vector.broadcast %96 : vector<1x32xf32> to vector<16x32xf32>
    %118 = arith.addf %116, %117 : vector<16x32xf32>
    %119 = arith.truncf %118 : vector<16x32xf32> to vector<16x32xbf16>
    %c1 = arith.constant 1 : index
    %c0_55 = arith.constant 0 : index
    %c0_56 = arith.constant 0 : index
    %120 = vector.load %arg2[%c1, %c0_55, %c0_56] : memref<2x32x96xbf16, #tpu.memory_space<vmem>>, vector<1x32x96xbf16>
    %121 = vector.shape_cast %120 : vector<1x32x96xbf16> to vector<32x96xbf16>
    %cst_57 = arith.constant dense<0.000000e+00> : vector<16x96xf32>
    %122 = tpu.matmul %119, %121, %cst_57 {dimension_numbers = #tpu.dot_dimension_numbers<[1], [0], [0], [1], [0, 0, 1, 1], [], []>} : vector<16x32xbf16>, vector<32x96xbf16>, vector<16x96xf32> -> vector<16x96xf32>
    %123 = vector.extract_strided_slice %122 {offsets = [0, 0], sizes = [16, 32], strides = [1, 1]} : vector<16x96xf32> to vector<16x32xf32>
    %124 = vector.shape_cast %123 : vector<16x32xf32> to vector<2x8x32xf32>
    %125 = arith.truncf %124 : vector<2x8x32xf32> to vector<2x8x32xbf16>
    %126 = vector.extract_strided_slice %122 {offsets = [0, 32], sizes = [16, 32], strides = [1, 1]} : vector<16x96xf32> to vector<16x32xf32>
    %127 = vector.shape_cast %126 : vector<16x32xf32> to vector<2x8x32xf32>
    %128 = vector.extract_strided_slice %122 {offsets = [0, 64], sizes = [16, 32], strides = [1, 1]} : vector<16x96xf32> to vector<16x32xf32>
    %129 = vector.shape_cast %128 : vector<16x32xf32> to vector<2x8x32xf32>
    %130 = tpu.concatenate %127, %127, %127, %127 in 1 : vector<2x8x32xf32>, vector<2x8x32xf32>, vector<2x8x32xf32>, vector<2x8x32xf32> -> vector<2x32x32xf32>
    %131 = vector.shape_cast %1 : vector<32x32xf32> to vector<1x32x32xf32>
    %132 = vector.broadcast %131 : vector<1x32x32xf32> to vector<2x32x32xf32>
    %133 = arith.mulf %130, %132 : vector<2x32x32xf32>
    %134 = arith.truncf %133 : vector<2x32x32xf32> to vector<2x32x32xbf16>
    %135 = tpu.concatenate %129, %129, %129, %129 in 1 : vector<2x8x32xf32>, vector<2x8x32xf32>, vector<2x8x32xf32>, vector<2x8x32xf32> -> vector<2x32x32xf32>
    %136 = vector.shape_cast %1 : vector<32x32xf32> to vector<1x32x32xf32>
    %137 = vector.broadcast %136 : vector<1x32x32xf32> to vector<2x32x32xf32>
    %138 = arith.mulf %135, %137 : vector<2x32x32xf32>
    %139 = arith.truncf %138 : vector<2x32x32xf32> to vector<2x32x32xbf16>
    "tpu.trace_start"() <{level = 10 : i32, message = "bqc,bjc->bqj"}> : () -> ()
    %cst_58 = arith.constant dense<0.000000e+00> : vector<2x8x32xf32>
    %140 = tpu.matmul %125, %134, %cst_58 {dimension_numbers = #tpu.dot_dimension_numbers<[2], [2], [1], [1], [0, 0, 0, 1, 1, 1], [0], [0]>} : vector<2x8x32xbf16>, vector<2x32x32xbf16>, vector<2x8x32xf32> -> vector<2x8x32xf32>
    "tpu.trace_stop"() : () -> ()
    %cst_59 = arith.constant dense<0xFF800000> : vector<2x8xf32>
    %141 = vector.multi_reduction <maximumf>, %140, %cst_59 [2] : vector<2x8x32xf32> to vector<2x8xf32>
    %142 = vector.shape_cast %141 : vector<2x8xf32> to vector<2x8x1xf32>
    %143 = vector.broadcast %142 : vector<2x8x1xf32> to vector<2x8x32xf32>
    %144 = arith.subf %140, %143 : vector<2x8x32xf32>
    %145 = math.exp %144 : vector<2x8x32xf32>
    %146 = arith.truncf %145 : vector<2x8x32xf32> to vector<2x8x32xbf16>
    "tpu.trace_start"() <{level = 10 : i32, message = "bqj,bjc->bqc"}> : () -> ()
    %cst_60 = arith.constant dense<0.000000e+00> : vector<2x8x32xf32>
    %147 = tpu.matmul %146, %139, %cst_60 {dimension_numbers = #tpu.dot_dimension_numbers<[2], [1], [1], [2], [0, 0, 0, 1, 1, 2], [0], [0]>} : vector<2x8x32xbf16>, vector<2x32x32xbf16>, vector<2x8x32xf32> -> vector<2x8x32xf32>
    "tpu.trace_stop"() : () -> ()
    %148 = vector.shape_cast %147 : vector<2x8x32xf32> to vector<16x32xf32>
    %149 = vector.shape_cast %146 : vector<2x8x32xbf16> to vector<16x32xbf16>
    %cst_61 = arith.constant dense<0.000000e+00> : vector<16x32xf32>
    %150 = tpu.matmul %149, %2, %cst_61 {dimension_numbers = #tpu.dot_dimension_numbers<[1], [0], [0], [1], [0, 0, 1, 1], [], []>} : vector<16x32xbf16>, vector<32x32xbf16>, vector<16x32xf32> -> vector<16x32xf32>
    %cst_62 = arith.constant 1.000000e-30 : f32
    %151 = vector.broadcast %cst_62 : f32 to vector<16x32xf32>
    %152 = arith.maximumf %150, %151 : vector<16x32xf32>
    %153 = tpu.reciprocal %152 {approx = true} : vector<16x32xf32> -> vector<16x32xf32>
    %154 = arith.mulf %148, %153 : vector<16x32xf32>
    %155 = arith.truncf %154 : vector<16x32xf32> to vector<16x32xbf16>
    %c1_63 = arith.constant 1 : index
    %c0_64 = arith.constant 0 : index
    %c0_65 = arith.constant 0 : index
    %156 = vector.load %arg3[%c1_63, %c0_64, %c0_65] : memref<2x32x32xbf16, #tpu.memory_space<vmem>>, vector<1x32x32xbf16>
    %157 = vector.shape_cast %156 : vector<1x32x32xbf16> to vector<32x32xbf16>
    %cst_66 = arith.constant dense<0.000000e+00> : vector<16x32xf32>
    %158 = tpu.matmul %155, %157, %cst_66 {dimension_numbers = #tpu.dot_dimension_numbers<[1], [0], [0], [1], [0, 0, 1, 1], [], []>} : vector<16x32xbf16>, vector<32x32xbf16>, vector<16x32xf32> -> vector<16x32xf32>
    %c1_67 = arith.constant 1 : index
    %c0_68 = arith.constant 0 : index
    %c0_69 = arith.constant 0 : index
    %159 = vector.load %arg4[%c1_67, %c0_68, %c0_69] : memref<2x1x32xf32, #tpu.memory_space<vmem>>, vector<1x1x32xf32>
    %160 = vector.shape_cast %159 : vector<1x1x32xf32> to vector<1x32xf32>
    %161 = vector.broadcast %160 : vector<1x32xf32> to vector<16x32xf32>
    %162 = arith.addf %158, %161 : vector<16x32xf32>
    %163 = arith.addf %162, %118 : vector<16x32xf32>
    %c1_70 = arith.constant 1 : index
    %c0_71 = arith.constant 0 : index
    %c0_72 = arith.constant 0 : index
    %164 = vector.load %arg5[%c1_70, %c0_71, %c0_72] : memref<2x1x32xf32, #tpu.memory_space<vmem>>, vector<1x1x32xf32>
    %165 = vector.shape_cast %164 : vector<1x1x32xf32> to vector<1x32xf32>
    %c1_73 = arith.constant 1 : index
    %c0_74 = arith.constant 0 : index
    %c0_75 = arith.constant 0 : index
    %166 = vector.load %arg6[%c1_73, %c0_74, %c0_75] : memref<2x1x32xf32, #tpu.memory_space<vmem>>, vector<1x1x32xf32>
    %167 = vector.shape_cast %166 : vector<1x1x32xf32> to vector<1x32xf32>
    %cst_76 = arith.constant dense<0.000000e+00> : vector<16xf32>
    %168 = vector.multi_reduction <add>, %163, %cst_76 [1] : vector<16x32xf32> to vector<16xf32>
    %169 = vector.shape_cast %168 : vector<16xf32> to vector<16x1xf32>
    %cst_77 = arith.constant 3.200000e+01 : f32
    %170 = vector.broadcast %cst_77 : f32 to vector<16x1xf32>
    %171 = arith.divf %169, %170 : vector<16x1xf32>
    %172 = vector.broadcast %171 : vector<16x1xf32> to vector<16x32xf32>
    %173 = arith.subf %163, %172 : vector<16x32xf32>
    %174 = arith.mulf %173, %173 : vector<16x32xf32>
    %cst_78 = arith.constant dense<0.000000e+00> : vector<16xf32>
    %175 = vector.multi_reduction <add>, %174, %cst_78 [1] : vector<16x32xf32> to vector<16xf32>
    %176 = vector.shape_cast %175 : vector<16xf32> to vector<16x1xf32>
    %cst_79 = arith.constant 3.200000e+01 : f32
    %177 = vector.broadcast %cst_79 : f32 to vector<16x1xf32>
    %178 = arith.divf %176, %177 : vector<16x1xf32>
    %179 = vector.broadcast %171 : vector<16x1xf32> to vector<16x32xf32>
    %180 = arith.subf %163, %179 : vector<16x32xf32>
    %cst_80 = arith.constant 9.99999974E-6 : f32
    %181 = vector.broadcast %cst_80 : f32 to vector<16x1xf32>
    %182 = arith.addf %178, %181 : vector<16x1xf32>
    %183 = math.rsqrt %182 : vector<16x1xf32>
    %184 = vector.broadcast %183 : vector<16x1xf32> to vector<16x32xf32>
    %185 = arith.mulf %180, %184 : vector<16x32xf32>
    %186 = vector.broadcast %165 : vector<1x32xf32> to vector<16x32xf32>
    %187 = arith.mulf %185, %186 : vector<16x32xf32>
    %188 = vector.broadcast %167 : vector<1x32xf32> to vector<16x32xf32>
    %189 = arith.addf %187, %188 : vector<16x32xf32>
    %190 = arith.truncf %189 : vector<16x32xf32> to vector<16x32xbf16>
    %c1_81 = arith.constant 1 : index
    %c0_82 = arith.constant 0 : index
    %c0_83 = arith.constant 0 : index
    %191 = vector.load %arg7[%c1_81, %c0_82, %c0_83] : memref<2x32x64xbf16, #tpu.memory_space<vmem>>, vector<1x32x64xbf16>
    %192 = vector.shape_cast %191 : vector<1x32x64xbf16> to vector<32x64xbf16>
    %cst_84 = arith.constant dense<0.000000e+00> : vector<16x64xf32>
    %193 = tpu.matmul %190, %192, %cst_84 {dimension_numbers = #tpu.dot_dimension_numbers<[1], [0], [0], [1], [0, 0, 1, 1], [], []>} : vector<16x32xbf16>, vector<32x64xbf16>, vector<16x64xf32> -> vector<16x64xf32>
    %c1_85 = arith.constant 1 : index
    %c0_86 = arith.constant 0 : index
    %c0_87 = arith.constant 0 : index
    %194 = vector.load %arg8[%c1_85, %c0_86, %c0_87] : memref<2x1x64xf32, #tpu.memory_space<vmem>>, vector<1x1x64xf32>
    %195 = vector.shape_cast %194 : vector<1x1x64xf32> to vector<1x64xf32>
    %196 = vector.broadcast %195 : vector<1x64xf32> to vector<16x64xf32>
    %197 = arith.addf %193, %196 : vector<16x64xf32>
    %cst_88 = arith.constant 0.000000e+00 : f32
    %198 = vector.broadcast %cst_88 : f32 to vector<16x64xf32>
    %199 = arith.maximumf %197, %198 : vector<16x64xf32>
    %200 = arith.truncf %199 : vector<16x64xf32> to vector<16x64xbf16>
    %c1_89 = arith.constant 1 : index
    %c0_90 = arith.constant 0 : index
    %c0_91 = arith.constant 0 : index
    %201 = vector.load %arg9[%c1_89, %c0_90, %c0_91] : memref<2x64x32xbf16, #tpu.memory_space<vmem>>, vector<1x64x32xbf16>
    %202 = vector.shape_cast %201 : vector<1x64x32xbf16> to vector<64x32xbf16>
    %cst_92 = arith.constant dense<0.000000e+00> : vector<16x32xf32>
    %203 = tpu.matmul %200, %202, %cst_92 {dimension_numbers = #tpu.dot_dimension_numbers<[1], [0], [0], [1], [0, 0, 1, 1], [], []>} : vector<16x64xbf16>, vector<64x32xbf16>, vector<16x32xf32> -> vector<16x32xf32>
    %c1_93 = arith.constant 1 : index
    %c0_94 = arith.constant 0 : index
    %c0_95 = arith.constant 0 : index
    %204 = vector.load %arg10[%c1_93, %c0_94, %c0_95] : memref<2x1x32xf32, #tpu.memory_space<vmem>>, vector<1x1x32xf32>
    %205 = vector.shape_cast %204 : vector<1x1x32xf32> to vector<1x32xf32>
    %206 = vector.broadcast %205 : vector<1x32xf32> to vector<16x32xf32>
    %207 = arith.addf %203, %206 : vector<16x32xf32>
    %208 = arith.addf %207, %189 : vector<16x32xf32>
    %c1_96 = arith.constant 1 : index
    %c0_97 = arith.constant 0 : index
    %c0_98 = arith.constant 0 : index
    %209 = vector.load %arg11[%c1_96, %c0_97, %c0_98] : memref<2x1x32xf32, #tpu.memory_space<vmem>>, vector<1x1x32xf32>
    %210 = vector.shape_cast %209 : vector<1x1x32xf32> to vector<1x32xf32>
    %c1_99 = arith.constant 1 : index
    %c0_100 = arith.constant 0 : index
    %c0_101 = arith.constant 0 : index
    %211 = vector.load %arg12[%c1_99, %c0_100, %c0_101] : memref<2x1x32xf32, #tpu.memory_space<vmem>>, vector<1x1x32xf32>
    %212 = vector.shape_cast %211 : vector<1x1x32xf32> to vector<1x32xf32>
    %cst_102 = arith.constant dense<0.000000e+00> : vector<16xf32>
    %213 = vector.multi_reduction <add>, %208, %cst_102 [1] : vector<16x32xf32> to vector<16xf32>
    %214 = vector.shape_cast %213 : vector<16xf32> to vector<16x1xf32>
    %cst_103 = arith.constant 3.200000e+01 : f32
    %215 = vector.broadcast %cst_103 : f32 to vector<16x1xf32>
    %216 = arith.divf %214, %215 : vector<16x1xf32>
    %217 = vector.broadcast %216 : vector<16x1xf32> to vector<16x32xf32>
    %218 = arith.subf %208, %217 : vector<16x32xf32>
    %219 = arith.mulf %218, %218 : vector<16x32xf32>
    %cst_104 = arith.constant dense<0.000000e+00> : vector<16xf32>
    %220 = vector.multi_reduction <add>, %219, %cst_104 [1] : vector<16x32xf32> to vector<16xf32>
    %221 = vector.shape_cast %220 : vector<16xf32> to vector<16x1xf32>
    %cst_105 = arith.constant 3.200000e+01 : f32
    %222 = vector.broadcast %cst_105 : f32 to vector<16x1xf32>
    %223 = arith.divf %221, %222 : vector<16x1xf32>
    %224 = vector.broadcast %216 : vector<16x1xf32> to vector<16x32xf32>
    %225 = arith.subf %208, %224 : vector<16x32xf32>
    %cst_106 = arith.constant 9.99999974E-6 : f32
    %226 = vector.broadcast %cst_106 : f32 to vector<16x1xf32>
    %227 = arith.addf %223, %226 : vector<16x1xf32>
    %228 = math.rsqrt %227 : vector<16x1xf32>
    %229 = vector.broadcast %228 : vector<16x1xf32> to vector<16x32xf32>
    %230 = arith.mulf %225, %229 : vector<16x32xf32>
    %231 = vector.broadcast %210 : vector<1x32xf32> to vector<16x32xf32>
    %232 = arith.mulf %230, %231 : vector<16x32xf32>
    %233 = vector.broadcast %212 : vector<1x32xf32> to vector<16x32xf32>
    %234 = arith.addf %232, %233 : vector<16x32xf32>
    %235 = vector.shape_cast %234 : vector<16x32xf32> to vector<2x8x32xf32>
    %cst_107 = arith.constant dense<0.000000e+00> : vector<2x32xf32>
    %236 = vector.multi_reduction <add>, %235, %cst_107 [1] : vector<2x8x32xf32> to vector<2x32xf32>
    %cst_108 = arith.constant 8.000000e+00 : f32
    %237 = vector.broadcast %cst_108 : f32 to vector<2x32xf32>
    %238 = arith.divf %236, %237 : vector<2x32xf32>
    %239 = arith.truncf %238 : vector<2x32xf32> to vector<2x32xbf16>
    %c0_109 = arith.constant 0 : index
    %c0_110 = arith.constant 0 : index
    %240 = vector.load %arg13[%c0_109, %c0_110] : memref<32x128xbf16, #tpu.memory_space<vmem>>, vector<32x128xbf16>
    %cst_111 = arith.constant dense<0.000000e+00> : vector<2x128xf32>
    %241 = tpu.matmul %239, %240, %cst_111 {dimension_numbers = #tpu.dot_dimension_numbers<[1], [0], [0], [1], [0, 0, 1, 1], [], []>} : vector<2x32xbf16>, vector<32x128xbf16>, vector<2x128xf32> -> vector<2x128xf32>
    %c0_112 = arith.constant 0 : index
    %c0_113 = arith.constant 0 : index
    %242 = vector.load %arg14[%c0_112, %c0_113] : memref<1x128xf32, #tpu.memory_space<vmem>>, vector<1x128xf32>
    %243 = vector.broadcast %242 : vector<1x128xf32> to vector<2x128xf32>
    %244 = arith.addf %241, %243 : vector<2x128xf32>
    %cst_114 = arith.constant dense<0xFF800000> : vector<2xf32>
    %245 = vector.multi_reduction <maximumf>, %244, %cst_114 [1] : vector<2x128xf32> to vector<2xf32>
    %246 = vector.shape_cast %245 : vector<2xf32> to vector<2x1xf32>
    %247 = vector.broadcast %246 : vector<2x1xf32> to vector<2x128xf32>
    %248 = arith.subf %244, %247 : vector<2x128xf32>
    %249 = math.exp %248 : vector<2x128xf32>
    %cst_115 = arith.constant dense<0.000000e+00> : vector<2xf32>
    %250 = vector.multi_reduction <add>, %249, %cst_115 [1] : vector<2x128xf32> to vector<2xf32>
    %251 = vector.shape_cast %250 : vector<2xf32> to vector<2x1xf32>
    %252 = math.log %251 : vector<2x1xf32>
    %253 = vector.broadcast %252 : vector<2x1xf32> to vector<2x128xf32>
    %254 = arith.subf %248, %253 : vector<2x128xf32>
    %c0_116 = arith.constant 0 : index
    %c0_117 = arith.constant 0 : index
    %255 = vector.load %arg15[%c0_116, %c0_117] : memref<2x128xf32, #tpu.memory_space<vmem>>, vector<2x128xf32>
    tpu.vector_store %arg15[%c0_116, %c0_117], %254 {strides = array<i32>} : memref<2x128xf32, #tpu.memory_space<vmem>>, vector<2x128xf32>,
    return
  }
}

</mosaic_0001>

<llo_original>
// kernel: tpu_custom_call.1
$region0: #{tpu_custom_call.1}
  #allocation0 [shape = 'u32[]', space=smem, size = 0x4, offset = 0x4, fixed_abs, tag = 'smem constant byte address 0x4 - core index']
  #allocation1 [shape = 'u32[144,128]{1,0:T(1,128)}', space=vmem, size = 0x12000, scoped, tag = 'internal scratch']
  %s0 = inlined_call_operand.hbm [shape: f32[16,32], index: 0, kind: input, shape index: {}]
  %s1 = inlined_call_operand.vmem [shape: f32[32,32], index: 1, kind: input, shape index: {}]
  %s2 = inlined_call_operand.vmem [shape: bf16[2,32,96], index: 2, kind: input, shape index: {}]
  %s3 = inlined_call_operand.vmem [shape: bf16[2,32,32], index: 3, kind: input, shape index: {}]
  %s4 = inlined_call_operand.hbm [shape: f32[2,1,32], index: 4, kind: input, shape index: {}]
  %s5 = inlined_call_operand.hbm [shape: f32[2,1,32], index: 5, kind: input, shape index: {}]
  %s6 = inlined_call_operand.hbm [shape: f32[2,1,32], index: 6, kind: input, shape index: {}]
  %s7 = inlined_call_operand.hbm [shape: bf16[2,32,64], index: 7, kind: input, shape index: {}]
  %s8 = inlined_call_operand.hbm [shape: f32[2,1,64], index: 8, kind: input, shape index: {}]
  %s9 = inlined_call_operand.vmem [shape: bf16[2,64,32], index: 9, kind: input, shape index: {}]
  %s10 = inlined_call_operand.hbm [shape: f32[2,1,32], index: 10, kind: input, shape index: {}]
  %s11 = inlined_call_operand.hbm [shape: f32[2,1,32], index: 11, kind: input, shape index: {}]
  %s12 = inlined_call_operand.hbm [shape: f32[2,1,32], index: 12, kind: input, shape index: {}]
  %s13 = inlined_call_operand.vmem [shape: bf16[32,128], index: 13, kind: input, shape index: {}]
  %s14 = inlined_call_operand.vmem [shape: f32[1,128], index: 14, kind: input, shape index: {}]
  %s15 = inlined_call_operand.hbm [shape: f32[2,128], index: 15, kind: output, shape index: {}]
  %s16 = sld [smem:[#allocation0]]
  $region106: #{tpu_custom_call.1} parent=0
    _
  %s18 = ssub.s32 1, %s16
  %s19 = scalar_select 0, %s18, %s16
  $region1: #{tpu_custom_call.1} parent=0
    #allocation2 [shape = 'u8[8192]{0}', space=vmem, size = 0x2000, scoped, tag = 'input window, operand 0, single buffered']
    #allocation3 [shape = 's32[1]{0}', space=sflag, size = 0x4, scoped, tag = 'scoped memory for tpu_custom_call.1']
    #allocation4 [shape = 's32[1]{0}', space=sflag, size = 0x4, scoped, tag = 'scoped memory for tpu_custom_call.1']
    #allocation5 [shape = 'u8[1024]{0}', space=vmem, size = 0x400, scoped, tag = 'input window, operand 4, single buffered']
    #allocation6 [shape = 's32[1]{0}', space=sflag, size = 0x4, scoped, tag = 'scoped memory for tpu_custom_call.1']
    #allocation7 [shape = 'u8[1024]{0}', space=vmem, size = 0x400, scoped, tag = 'input window, operand 5, single buffered']
    #allocation8 [shape = 'u8[1024]{0}', space=vmem, size = 0x400, scoped, tag = 'input window, operand 6, single buffered']
    #allocation9 [shape = 's32[1]{0}', space=sflag, size = 0x4, scoped, tag = 'scoped memory for tpu_custom_call.1']
    #allocation10 [shape = 'u8[16384]{0}', space=vmem, size = 0x4000, scoped, tag = 'input window, operand 7, single buffered']
    #allocation11 [shape = 'u8[1024]{0}', space=vmem, size = 0x400, scoped, tag = 'input window, operand 8, single buffered']
    #allocation12 [shape = 's32[1]{0}', space=sflag, size = 0x4, scoped, tag = 'scoped memory for tpu_custom_call.1']
    #allocation13 [shape = 'u8[1024]{0}', space=vmem, size = 0x400, scoped, tag = 'input window, operand 10, single buffered']
    #allocation14 [shape = 'u8[1024]{0}', space=vmem, size = 0x400, scoped, tag = 'input window, operand 11, single buffered']
    #allocation15 [shape = 's32[1]{0}', space=sflag, size = 0x4, scoped, tag = 'scoped memory for tpu_custom_call.1']
    #allocation16 [shape = 'u8[1024]{0}', space=vmem, size = 0x400, scoped, tag = 'input window, operand 12, single buffered']
    #allocation17 [shape = 'u8[1024]{0}', space=vmem, size = 0x400, scoped, tag = 'output window, operand 0, single buffered']
    %20 = vsyncpa [#allocation3], 0
    %21 = vsyncpa [#allocation6], 0
    %22 = vsyncpa [#allocation9], 0
    %23 = vsyncpa [#allocation12], 0
    %24 = vsyncpa [#allocation15], 0
    %25 = vsyncpa [#allocation4], 0
    // Predicated region
    $region2: #{tpu_custom_call.1} parent=1 // pred_check
      _
    $region3: #{tpu_custom_call.1} parent=1 // pred_check_branch
      %27 = sbr.rel (0) target = $region5
    $region4: #{tpu_custom_call.1} parent=1 // pred_region
      %s29 = ssub.s32 256, 256
      %30 = vsyncadd [#allocation3], %s29
      %s31 = sshll.u32 [#allocation2], 4
      %s32 = int_to_ptr.vmem [resolvable:$true] %s31
      %37 = dma.hbm_to_vmem [thread:$0]  %s0, 256, %s32, [#allocation3], 128, 128, 8
    $region5: #{tpu_custom_call.1} parent=1 // pred_fallthru
      _
    // Predicated region
    $region6: #{tpu_custom_call.1} parent=1 // pred_check
      _
    $region7: #{tpu_custom_call.1} parent=1 // pred_check_branch
      %39 = sbr.rel (0) target = $region9
    $region8: #{tpu_custom_call.1} parent=1 // pred_region
      _
    $region9: #{tpu_custom_call.1} parent=1 // pred_fallthru
      _
    // Predicated region
    $region10: #{tpu_custom_call.1} parent=1 // pred_check
      _
    $region11: #{tpu_custom_call.1} parent=1 // pred_check_branch
      %41 = sbr.rel (0) target = $region13
    $region12: #{tpu_custom_call.1} parent=1 // pred_region
      _
    $region13: #{tpu_custom_call.1} parent=1 // pred_fallthru
      _
    // Predicated region
    $region14: #{tpu_custom_call.1} parent=1 // pred_check
      _
    $region15: #{tpu_custom_call.1} parent=1 // pred_check_branch
      %43 = sbr.rel (0) target = $region17
    $region16: #{tpu_custom_call.1} parent=1 // pred_region
      _
    $region17: #{tpu_custom_call.1} parent=1 // pred_fallthru
      _
    // Predicated region
    $region18: #{tpu_custom_call.1} parent=1 // pred_check
      _
    $region19: #{tpu_custom_call.1} parent=1 // pred_check_branch
      %45 = sbr.rel (0) target = $region21
    $region20: #{tpu_custom_call.1} parent=1 // pred_region
      %s47 = ssub.s32 32, 32
      %48 = vsyncadd [#allocation6], %s47
      %s49 = sshll.u32 [#allocation5], 4
      %s50 = int_to_ptr.vmem [resolvable:$true] %s49
      %55 = dma.hbm_to_vmem [thread:$0]  %s4, 32, %s50, [#allocation6], 16, 16, 1
    $region21: #{tpu_custom_call.1} parent=1 // pred_fallthru
      _
    // Predicated region
    $region22: #{tpu_custom_call.1} parent=1 // pred_check
      _
    $region23: #{tpu_custom_call.1} parent=1 // pred_check_branch
      %57 = sbr.rel (0) target = $region25
    $region24: #{tpu_custom_call.1} parent=1 // pred_region
      %s59 = ssub.s32 32, 32
      %60 = vsyncadd [#allocation6], %s59
      %s61 = sshll.u32 [#allocation7], 4
      %s62 = int_to_ptr.vmem [resolvable:$true] %s61
      %67 = dma.hbm_to_vmem [thread:$0]  %s5, 32, %s62, [#allocation6], 16, 16, 1
    $region25: #{tpu_custom_call.1} parent=1 // pred_fallthru
      _
    // Predicated region
    $region26: #{tpu_custom_call.1} parent=1 // pred_check
      _
    $region27: #{tpu_custom_call.1} parent=1 // pred_check_branch
      %69 = sbr.rel (0) target = $region29
    $region28: #{tpu_custom_call.1} parent=1 // pred_region
      %s71 = ssub.s32 32, 32
      %72 = vsyncadd [#allocation9], %s71
      %s73 = sshll.u32 [#allocation8], 4
      %s74 = int_to_ptr.vmem [resolvable:$true] %s73
      %79 = dma.hbm_to_vmem [thread:$0]  %s6, 32, %s74, [#allocation9], 16, 16, 1
    $region29: #{tpu_custom_call.1} parent=1 // pred_fallthru
      _
    // Predicated region
    $region30: #{tpu_custom_call.1} parent=1 // pred_check
      _
    $region31: #{tpu_custom_call.1} parent=1 // pred_check_branch
      %81 = sbr.rel (0) target = $region33
    $region32: #{tpu_custom_call.1} parent=1 // pred_region
      %s83 = ssub.s32 512, 512
      %84 = vsyncadd [#allocation9], %s83
      %s85 = sshll.u32 [#allocation10], 4
      %s86 = int_to_ptr.vmem [resolvable:$true] %s85
      %91 = dma.hbm_to_vmem [thread:$0]  %s7, 512, %s86, [#allocation9], 64, 64, 4
    $region33: #{tpu_custom_call.1} parent=1 // pred_fallthru
      _
    // Predicated region
    $region34: #{tpu_custom_call.1} parent=1 // pred_check
      _
    $region35: #{tpu_custom_call.1} parent=1 // pred_check_branch
      %93 = sbr.rel (0) target = $region37
    $region36: #{tpu_custom_call.1} parent=1 // pred_region
      %s95 = ssub.s32 32, 32
      %96 = vsyncadd [#allocation12], %s95
      %s97 = sshll.u32 [#allocation11], 4
      %s98 = int_to_ptr.vmem [resolvable:$true] %s97
      %103 = dma.hbm_to_vmem [thread:$0]  %s8, 32, %s98, [#allocation12], 16, 16, 1
    $region37: #{tpu_custom_call.1} parent=1 // pred_fallthru
      _
    // Predicated region
    $region38: #{tpu_custom_call.1} parent=1 // pred_check
      _
    $region39: #{tpu_custom_call.1} parent=1 // pred_check_branch
      %105 = sbr.rel (0) target = $region41
    $region40: #{tpu_custom_call.1} parent=1 // pred_region
      _
    $region41: #{tpu_custom_call.1} parent=1 // pred_fallthru
      _
    // Predicated region
    $region42: #{tpu_custom_call.1} parent=1 // pred_check
      _
    $region43: #{tpu_custom_call.1} parent=1 // pred_check_branch
      %107 = sbr.rel (0) target = $region45
    $region44: #{tpu_custom_call.1} parent=1 // pred_region
      %s109 = ssub.s32 32, 32
      %110 = vsyncadd [#allocation12], %s109
      %s111 = sshll.u32 [#allocation13], 4
      %s112 = int_to_ptr.vmem [resolvable:$true] %s111
      %117 = dma.hbm_to_vmem [thread:$0]  %s10, 32, %s112, [#allocation12], 16, 16, 1
    $region45: #{tpu_custom_call.1} parent=1 // pred_fallthru
      _
    // Predicated region
    $region46: #{tpu_custom_call.1} parent=1 // pred_check
      _
    $region47: #{tpu_custom_call.1} parent=1 // pred_check_branch
      %119 = sbr.rel (0) target = $region49
    $region48: #{tpu_custom_call.1} parent=1 // pred_region
      %s121 = ssub.s32 32, 32
      %122 = vsyncadd [#allocation15], %s121
      %s123 = sshll.u32 [#allocation14], 4
      %s124 = int_to_ptr.vmem [resolvable:$true] %s123
      %129 = dma.hbm_to_vmem [thread:$0]  %s11, 32, %s124, [#allocation15], 16, 16, 1
    $region49: #{tpu_custom_call.1} parent=1 // pred_fallthru
      _
    // Predicated region
    $region50: #{tpu_custom_call.1} parent=1 // pred_check
      _
    $region51: #{tpu_custom_call.1} parent=1 // pred_check_branch
      %131 = sbr.rel (0) target = $region53
    $region52: #{tpu_custom_call.1} parent=1 // pred_region
      %s133 = ssub.s32 32, 32
      %134 = vsyncadd [#allocation15], %s133
      %s135 = sshll.u32 [#allocation16], 4
      %s136 = int_to_ptr.vmem [resolvable:$true] %s135
      %141 = dma.hbm_to_vmem [thread:$0]  %s12, 32, %s136, [#allocation15], 16, 16, 1
    $region53: #{tpu_custom_call.1} parent=1 // pred_fallthru
      _
    // Predicated region
    $region54: #{tpu_custom_call.1} parent=1 // pred_check
      _
    $region55: #{tpu_custom_call.1} parent=1 // pred_check_branch
      %143 = sbr.rel (0) target = $region57
    $region56: #{tpu_custom_call.1} parent=1 // pred_region
      _
    $region57: #{tpu_custom_call.1} parent=1 // pred_fallthru
      _
    // Predicated region
    $region58: #{tpu_custom_call.1} parent=1 // pred_check
      _
    $region59: #{tpu_custom_call.1} parent=1 // pred_check_branch
      %145 = sbr.rel (0) target = $region61
    $region60: #{tpu_custom_call.1} parent=1 // pred_region
      _
    $region61: #{tpu_custom_call.1} parent=1 // pred_fallthru
      _
    // Predicated region
    $region62: #{tpu_custom_call.1} parent=1 // pred_check
      _
    $region63: #{tpu_custom_call.1} parent=1 // pred_check_branch
      %147 = sbr.rel (0) target = $region65
    $region64: #{tpu_custom_call.1} parent=1 // pred_region
      %148 = dma.done [#allocation3], 256
    $region65: #{tpu_custom_call.1} parent=1 // pred_fallthru
      _
    // Predicated region
    $region66: #{tpu_custom_call.1} parent=1 // pred_check
      _
    $region67: #{tpu_custom_call.1} parent=1 // pred_check_branch
      %150 = sbr.rel (0) target = $region69
    $region68: #{tpu_custom_call.1} parent=1 // pred_region
      %151 = dma.done [#allocation6], 32
    $region69: #{tpu_custom_call.1} parent=1 // pred_fallthru
      _
    // Predicated region
    $region70: #{tpu_custom_call.1} parent=1 // pred_check
      _
    $region71: #{tpu_custom_call.1} parent=1 // pred_check_branch
      %153 = sbr.rel (0) target = $region73
    $region72: #{tpu_custom_call.1} parent=1 // pred_region
      %154 = dma.done [#allocation6], 32
    $region73: #{tpu_custom_call.1} parent=1 // pred_fallthru
      _
    // Predicated region
    $region74: #{tpu_custom_call.1} parent=1 // pred_check
      _
    $region75: #{tpu_custom_call.1} parent=1 // pred_check_branch
      %156 = sbr.rel (0) target = $region77
    $region76: #{tpu_custom_call.1} parent=1 // pred_region
      %157 = dma.done [#allocation9], 32
    $region77: #{tpu_custom_call.1} parent=1 // pred_fallthru
      _
    // Predicated region
    $region78: #{tpu_custom_call.1} parent=1 // pred_check
      _
    $region79: #{tpu_custom_call.1} parent=1 // pred_check_branch
      %159 = sbr.rel (0) target = $region81
    $region80: #{tpu_custom_call.1} parent=1 // pred_region
      %160 = dma.done [#allocation9], 512
    $region81: #{tpu_custom_call.1} parent=1 // pred_fallthru
      _
    // Predicated region
    $region82: #{tpu_custom_call.1} parent=1 // pred_check
      _
    $region83: #{tpu_custom_call.1} parent=1 // pred_check_branch
      %162 = sbr.rel (0) target = $region85
    $region84: #{tpu_custom_call.1} parent=1 // pred_region
      %163 = dma.done [#allocation12], 32
    $region85: #{tpu_custom_call.1} parent=1 // pred_fallthru
      _
    // Predicated region
    $region86: #{tpu_custom_call.1} parent=1 // pred_check
      _
    $region87: #{tpu_custom_call.1} parent=1 // pred_check_branch
      %165 = sbr.rel (0) target = $region89
    $region88: #{tpu_custom_call.1} parent=1 // pred_region
      %166 = dma.done [#allocation12], 32
    $region89: #{tpu_custom_call.1} parent=1 // pred_fallthru
      _
    // Predicated region
    $region90: #{tpu_custom_call.1} parent=1 // pred_check
      _
    $region91: #{tpu_custom_call.1} parent=1 // pred_check_branch
      %168 = sbr.rel (0) target = $region93
    $region92: #{tpu_custom_call.1} parent=1 // pred_region
      %169 = dma.done [#allocation15], 32
    $region93: #{tpu_custom_call.1} parent=1 // pred_fallthru
      _
    // Predicated region
    $region94: #{tpu_custom_call.1} parent=1 // pred_check
      _
    $region95: #{tpu_custom_call.1} parent=1 // pred_check_branch
      %171 = sbr.rel (0) target = $region97
    $region96: #{tpu_custom_call.1} parent=1 // pred_region
      %172 = dma.done [#allocation15], 32
    $region97: #{tpu_custom_call.1} parent=1 // pred_fallthru
      _
    %v174 = vld [vmem:[#allocation2] sm:$0xff]
    %v175 = vld [vmem:[#allocation2 + $0x8] sm:$0xff]
    %v176 = vld [vmem:[%s1] sm:$0xff]
    %v177 = vld [vmem:[%s1 + $0x8] sm:$0xff]
    %v178 = vld [vmem:[%s1 + $0x10] sm:$0xff]
    %v179 = vld [vmem:[%s1 + $0x18] sm:$0xff]
    %v180 = vpack.c.bf16 %v177, %v176
    %v181 = vpack.c.bf16 %v179, %v178
    %v182 = vpack.c.bf16 %v175, %v174
    %v183 = vld [vmem:[%s2] sm:$0xf]
    %v184 = vld [vmem:[%s2 + $0x4] sm:$0xf]
    %v185 = vld [vmem:[%s2 + $0x8] sm:$0xf]
    %v186 = vld [vmem:[%s2 + $0xc] sm:$0xf]
    %v191 = vunpack.c.l.b16 %v183
    %v192 = vunpack.c.l.b16 %v184
    %v193 = vunpack.c.l.b16 %v185
    %v194 = vunpack.c.l.b16 %v186
    %v195 = vpack.c.b16 %v192, %v191
    %v196 = vpack.c.b16 %v194, %v193
    %vm199 = vcmask 261120
    %v201 = vsel %vm199, %v182, 0
    %203 = vmatprep.subr.bf16.mxu0 0
    %204 = vmatpush1.bf16.msra.mxu0 %v195
    %205 = vmatprep.subr.bf16.mxu0 0
    %206 = vmatpush1.bf16.msra.mxu0 %v196
    %207 = vmatprep.subr.bf16.mxu0 0
    %208 = vmatpush1.bf16.msra.mxu0 0
    %209 = vmatprep.subr.bf16.mxu0 0
    %210 = vmatpush1.bf16.msra.mxu0 0
    %211 = vmatprep.subr.bf16.mxu0 0
    %212 = vmatpush1.bf16.msra.mxu0 0
    %213 = vmatprep.subr.bf16.mxu0 0
    %214 = vmatpush1.bf16.msra.mxu0 0
    %215 = vmatprep.subr.bf16.mxu0 0
    %216 = vmatpush1.bf16.msra.mxu0 0
    %217 = vmatprep.subr.bf16.mxu0 0
    %218 = vmatpush1.bf16.msra.mxu0 0
    %219 = vmatprep.subr.bf16.mxu0 0
    %220 = vmatpush1.bf16.msra.mxu0 0
    %221 = vmatprep.subr.bf16.mxu0 0
    %222 = vmatpush1.bf16.msra.mxu0 0
    %223 = vmatprep.subr.bf16.mxu0 0
    %224 = vmatpush1.bf16.msra.mxu0 0
    %225 = vmatprep.subr.bf16.mxu0 0
    %226 = vmatpush1.bf16.msra.mxu0 0
    %227 = vmatprep.subr.bf16.mxu0 0
    %228 = vmatpush1.bf16.msra.mxu0 0
    %229 = vmatprep.subr.bf16.mxu0 0
    %230 = vmatpush1.bf16.msra.mxu0 0
    %231 = vmatprep.subr.bf16.mxu0 0
    %232 = vmatpush1.bf16.msra.mxu0 0
    %233 = vmatprep.subr.bf16.mxu0 0
    %234 = vmatpush1.bf16.msra.mxu0 0
    %235 = vmatprep.mubr.bf16.mxu0 0
    %236 = vmatmul.mubr.bf16.gmra.mrb[0].mxu0 %v201
    %v237 = vpop.f32.mrb[0].mxu0
    %v238 = vadd.f32 0.0, %v237
    %v239 = vpop.f32.mrb[0].mxu0
    %v240 = vpop.f32.mrb[0].mxu0
    %v241 = vadd.f32 0.0, %v240
    %v242 = vpop.f32.mrb[0].mxu0
    %243 = vdwg.mxu0
    %v244 = vpack.c.bf16 %v238, %v238
    %v245 = vpack.c.bf16 %v241, %v241
    %250 = vrot.lane.b32.xlu0 %v176, 32
    %v251 = vpop.permute.xlu0 %250
    %252 = vrot.lane.b32.xlu0 %v177, 32
    %v253 = vpop.permute.xlu0 %252
    %254 = vrot.lane.b32.xlu0 %v178, 32
    %v255 = vpop.permute.xlu0 %254
    %256 = vrot.lane.b32.xlu0 %v179, 32
    %v257 = vpop.permute.xlu0 %256
    %v262 = vmul.f32 %v238, %v251
    %v263 = vmul.f32 %v238, %v253
    %v264 = vmul.f32 %v238, %v255
    %v265 = vmul.f32 %v238, %v257
    %v266 = vmul.f32 %v241, %v251
    %v267 = vmul.f32 %v241, %v253
    %v268 = vmul.f32 %v241, %v255
    %v269 = vmul.f32 %v241, %v257
    %v270 = vpack.c.bf16 %v263, %v262
    %v271 = vpack.c.bf16 %v265, %v264
    %v272 = vpack.c.bf16 %v267, %v266
    %v273 = vpack.c.bf16 %v269, %v268
    %274 = vrot.lane.b32.xlu0 %v176, 64
    %v275 = vpop.permute.xlu0 %274
    %276 = vrot.lane.b32.xlu0 %v177, 64
    %v277 = vpop.permute.xlu0 %276
    %278 = vrot.lane.b32.xlu0 %v178, 64
    %v279 = vpop.permute.xlu0 %278
    %280 = vrot.lane.b32.xlu0 %v179, 64
    %v281 = vpop.permute.xlu0 %280
    %v286 = vmul.f32 %v238, %v275
    %v287 = vmul.f32 %v238, %v277
    %v288 = vmul.f32 %v238, %v279
    %v289 = vmul.f32 %v238, %v281
    %v290 = vmul.f32 %v241, %v275
    %v291 = vmul.f32 %v241, %v277
    %v292 = vmul.f32 %v241, %v279
    %v293 = vmul.f32 %v241, %v281
    %v294 = vpack.c.bf16 %v287, %v286
    %v295 = vpack.c.bf16 %v289, %v288
    %v296 = vpack.c.bf16 %v291, %v290
    %v297 = vpack.c.bf16 %v293, %v292
    %300 = vrot.lane.b32.xlu0 %v270, 96
    %v301 = vpop.permute.xlu0 %300
    %302 = vrot.lane.b32.xlu0 %v271, 96
    %v303 = vpop.permute.xlu0 %302
    %v305 = vsel %vm199, %v244, 0
    %v308 = vsel %vm199, %v301, 0
    %v311 = vsel %vm199, %v303, 0
    %313 = vmatprep.subr.bf16.mxu0 0
    %314 = vmatpush1.bf16.xpose.msra.mxu0 %v308
    %315 = vmatprep.subr.bf16.mxu0 0
    %316 = vmatpush1.bf16.xpose.msra.mxu0 %v311
    %317 = vmatprep.subr.bf16.mxu0 0
    %318 = vmatpush1.bf16.xpose.msra.mxu0 0
    %319 = vmatprep.subr.bf16.mxu0 0
    %320 = vmatpush1.bf16.xpose.msra.mxu0 0
    %321 = vmatprep.subr.bf16.mxu0 0
    %322 = vmatpush1.bf16.xpose.msra.mxu0 0
    %323 = vmatprep.subr.bf16.mxu0 0
    %324 = vmatpush1.bf16.xpose.msra.mxu0 0
    %325 = vmatprep.subr.bf16.mxu0 0
    %326 = vmatpush1.bf16.xpose.msra.mxu0 0
    %327 = vmatprep.subr.bf16.mxu0 0
    %328 = vmatpush1.bf16.xpose.msra.mxu0 0
    %329 = vmatprep.subr.bf16.mxu0 0
    %330 = vmatpush1.bf16.xpose.msra.mxu0 0
    %331 = vmatprep.subr.bf16.mxu0 0
    %332 = vmatpush1.bf16.xpose.msra.mxu0 0
    %333 = vmatprep.subr.bf16.mxu0 0
    %334 = vmatpush1.bf16.xpose.msra.mxu0 0
    %335 = vmatprep.subr.bf16.mxu0 0
    %336 = vmatpush1.bf16.xpose.msra.mxu0 0
    %337 = vmatprep.subr.bf16.mxu0 0
    %338 = vmatpush1.bf16.xpose.msra.mxu0 0
    %339 = vmatprep.subr.bf16.mxu0 0
    %340 = vmatpush1.bf16.xpose.msra.mxu0 0
    %341 = vmatprep.subr.bf16.mxu0 0
    %342 = vmatpush1.bf16.xpose.msra.mxu0 0
    %343 = vmatprep.subr.bf16.mxu0 0
    %344 = vmatpush1.bf16.xpose.msra.mxu0 0
    %345 = vmatprep.mubr.bf16.mxu0 0
    %346 = vmatmul.mubr.bf16.gmra.mrb[0].mxu0 %v305
    %v347 = vpop.f32.mrb[0].mxu0
    %v348 = vadd.f32 0.0, %v347
    %v349 = vpop.f32.mrb[0].mxu0
    %v350 = vpop.f32.mrb[0].mxu0
    %v351 = vpop.f32.mrb[0].mxu0
    %352 = vdwg.mxu0
    %355 = vrot.lane.b32.xlu0 %v272, 96
    %v356 = vpop.permute.xlu0 %355
    %357 = vrot.lane.b32.xlu0 %v273, 96
    %v358 = vpop.permute.xlu0 %357
    %v360 = vsel %vm199, %v245, 0
    %v363 = vsel %vm199, %v356, 0
    %v366 = vsel %vm199, %v358, 0
    %368 = vmatprep.subr.bf16.mxu0 0
    %369 = vmatpush1.bf16.xpose.msra.mxu0 %v363
    %370 = vmatprep.subr.bf16.mxu0 0
    %371 = vmatpush1.bf16.xpose.msra.mxu0 %v366
    %372 = vmatprep.subr.bf16.mxu0 0
    %373 = vmatpush1.bf16.xpose.msra.mxu0 0
    %374 = vmatprep.subr.bf16.mxu0 0
    %375 = vmatpush1.bf16.xpose.msra.mxu0 0
    %376 = vmatprep.subr.bf16.mxu0 0
    %377 = vmatpush1.bf16.xpose.msra.mxu0 0
    %378 = vmatprep.subr.bf16.mxu0 0
    %379 = vmatpush1.bf16.xpose.msra.mxu0 0
    %380 = vmatprep.subr.bf16.mxu0 0
    %381 = vmatpush1.bf16.xpose.msra.mxu0 0
    %382 = vmatprep.subr.bf16.mxu0 0
    %383 = vmatpush1.bf16.xpose.msra.mxu0 0
    %384 = vmatprep.subr.bf16.mxu0 0
    %385 = vmatpush1.bf16.xpose.msra.mxu0 0
    %386 = vmatprep.subr.bf16.mxu0 0
    %387 = vmatpush1.bf16.xpose.msra.mxu0 0
    %388 = vmatprep.subr.bf16.mxu0 0
    %389 = vmatpush1.bf16.xpose.msra.mxu0 0
    %390 = vmatprep.subr.bf16.mxu0 0
    %391 = vmatpush1.bf16.xpose.msra.mxu0 0
    %392 = vmatprep.subr.bf16.mxu0 0
    %393 = vmatpush1.bf16.xpose.msra.mxu0 0
    %394 = vmatprep.subr.bf16.mxu0 0
    %395 = vmatpush1.bf16.xpose.msra.mxu0 0
    %396 = vmatprep.subr.bf16.mxu0 0
    %397 = vmatpush1.bf16.xpose.msra.mxu0 0
    %398 = vmatprep.subr.bf16.mxu0 0
    %399 = vmatpush1.bf16.xpose.msra.mxu0 0
    %400 = vmatprep.mubr.bf16.mxu0 0
    %401 = vmatmul.mubr.bf16.gmra.mrb[0].mxu0 %v360
    %v402 = vpop.f32.mrb[0].mxu0
    %v403 = vadd.f32 0.0, %v402
    %v404 = vpop.f32.mrb[0].mxu0
    %v405 = vpop.f32.mrb[0].mxu0
    %v406 = vpop.f32.mrb[0].mxu0
    %407 = vdwg.mxu0
    %v408 = vsel %vm199, %v348, -inf
    %409 = vmax.xlane.f32.xlu0 %v408
    %v410 = vpop.xlane.xlu0 %409
    %v411 = vsel %vm199, %v403, -inf
    %412 = vmax.xlane.f32.xlu0 %v411
    %v413 = vpop.xlane.xlu0 %412
    %v414 = vsub.f32 %v348, %v410
    %v415 = vsub.f32 %v403, %v413
    %v416 = vmul.f32 %v414, 1.442695
    %v417 = vpow.pop %v416
    %v418 = vmul.f32 %v415, 1.442695
    %v419 = vpow.pop %v418
    %v420 = vpack.c.bf16 %v417, %v417
    %v421 = vpack.c.bf16 %v419, %v419
    %424 = vrot.lane.b32.xlu0 %v294, 64
    %v425 = vpop.permute.xlu0 %424
    %426 = vrot.lane.b32.xlu0 %v295, 64
    %v427 = vpop.permute.xlu0 %426
    %v431 = vsel %vm199, %v420, 0
    %433 = vmatprep.subr.bf16.mxu0 0
    %434 = vmatpush1.bf16.msra.mxu0 %v425
    %435 = vmatprep.subr.bf16.mxu0 0
    %436 = vmatpush1.bf16.msra.mxu0 %v427
    %437 = vmatprep.subr.bf16.mxu0 0
    %438 = vmatpush1.bf16.msra.mxu0 0
    %439 = vmatprep.subr.bf16.mxu0 0
    %440 = vmatpush1.bf16.msra.mxu0 0
    %441 = vmatprep.subr.bf16.mxu0 0
    %442 = vmatpush1.bf16.msra.mxu0 0
    %443 = vmatprep.subr.bf16.mxu0 0
    %444 = vmatpush1.bf16.msra.mxu0 0
    %445 = vmatprep.subr.bf16.mxu0 0
    %446 = vmatpush1.bf16.msra.mxu0 0
    %447 = vmatprep.subr.bf16.mxu0 0
    %448 = vmatpush1.bf16.msra.mxu0 0
    %449 = vmatprep.subr.bf16.mxu0 0
    %450 = vmatpush1.bf16.msra.mxu0 0
    %451 = vmatprep.subr.bf16.mxu0 0
    %452 = vmatpush1.bf16.msra.mxu0 0
    %453 = vmatprep.subr.bf16.mxu0 0
    %454 = vmatpush1.bf16.msra.mxu0 0
    %455 = vmatprep.subr.bf16.mxu0 0
    %456 = vmatpush1.bf16.msra.mxu0 0
    %457 = vmatprep.subr.bf16.mxu0 0
    %458 = vmatpush1.bf16.msra.mxu0 0
    %459 = vmatprep.subr.bf16.mxu0 0
    %460 = vmatpush1.bf16.msra.mxu0 0
    %461 = vmatprep.subr.bf16.mxu0 0
    %462 = vmatpush1.bf16.msra.mxu0 0
    %463 = vmatprep.subr.bf16.mxu0 0
    %464 = vmatpush1.bf16.msra.mxu0 0
    %465 = vmatprep.mubr.bf16.mxu0 0
    %466 = vmatmul.mubr.bf16.gmra.mrb[0].mxu0 %v431
    %v467 = vpop.f32.mrb[0].mxu0
    %v468 = vadd.f32 0.0, %v467
    %v469 = vpop.f32.mrb[0].mxu0
    %v470 = vpop.f32.mrb[0].mxu0
    %v471 = vpop.f32.mrb[0].mxu0
    %472 = vdwg.mxu0
    %475 = vrot.lane.b32.xlu0 %v296, 64
    %v476 = vpop.permute.xlu0 %475
    %477 = vrot.lane.b32.xlu0 %v297, 64
    %v478 = vpop.permute.xlu0 %477
    %v482 = vsel %vm199, %v421, 0
    %484 = vmatprep.subr.bf16.mxu0 0
    %485 = vmatpush1.bf16.msra.mxu0 %v476
    %486 = vmatprep.subr.bf16.mxu0 0
    %487 = vmatpush1.bf16.msra.mxu0 %v478
    %488 = vmatprep.subr.bf16.mxu0 0
    %489 = vmatpush1.bf16.msra.mxu0 0
    %490 = vmatprep.subr.bf16.mxu0 0
    %491 = vmatpush1.bf16.msra.mxu0 0
    %492 = vmatprep.subr.bf16.mxu0 0
    %493 = vmatpush1.bf16.msra.mxu0 0
    %494 = vmatprep.subr.bf16.mxu0 0
    %495 = vmatpush1.bf16.msra.mxu0 0
    %496 = vmatprep.subr.bf16.mxu0 0
    %497 = vmatpush1.bf16.msra.mxu0 0
    %498 = vmatprep.subr.bf16.mxu0 0
    %499 = vmatpush1.bf16.msra.mxu0 0
    %500 = vmatprep.subr.bf16.mxu0 0
    %501 = vmatpush1.bf16.msra.mxu0 0
    %502 = vmatprep.subr.bf16.mxu0 0
    %503 = vmatpush1.bf16.msra.mxu0 0
    %504 = vmatprep.subr.bf16.mxu0 0
    %505 = vmatpush1.bf16.msra.mxu0 0
    %506 = vmatprep.subr.bf16.mxu0 0
    %507 = vmatpush1.bf16.msra.mxu0 0
    %508 = vmatprep.subr.bf16.mxu0 0
    %509 = vmatpush1.bf16.msra.mxu0 0
    %510 = vmatprep.subr.bf16.mxu0 0
    %511 = vmatpush1.bf16.msra.mxu0 0
    %512 = vmatprep.subr.bf16.mxu0 0
    %513 = vmatpush1.bf16.msra.mxu0 0
    %514 = vmatprep.subr.bf16.mxu0 0
    %515 = vmatpush1.bf16.msra.mxu0 0
    %516 = vmatprep.mubr.bf16.mxu0 0
    %517 = vmatmul.mubr.bf16.gmra.mrb[0].mxu0 %v482
    %v518 = vpop.f32.mrb[0].mxu0
    %v519 = vadd.f32 0.0, %v518
    %v520 = vpop.f32.mrb[0].mxu0
    %v521 = vpop.f32.mrb[0].mxu0
    %v522 = vpop.f32.mrb[0].mxu0
    %523 = vdwg.mxu0
    %v526 = vunpack.c.l.b16 %v420
    %v527 = vunpack.c.l.b16 %v421
    %v528 = vpack.c.b16 %v527, %v526
    %v530 = vsel %vm199, %v528, 0
    %532 = vmatprep.subr.bf16.mxu0 0
    %533 = vmatpush1.bf16.msra.mxu0 %v180
    %534 = vmatprep.subr.bf16.mxu0 0
    %535 = vmatpush1.bf16.msra.mxu0 %v181
    %536 = vmatprep.subr.bf16.mxu0 0
    %537 = vmatpush1.bf16.msra.mxu0 0
    %538 = vmatprep.subr.bf16.mxu0 0
    %539 = vmatpush1.bf16.msra.mxu0 0
    %540 = vmatprep.subr.bf16.mxu0 0
    %541 = vmatpush1.bf16.msra.mxu0 0
    %542 = vmatprep.subr.bf16.mxu0 0
    %543 = vmatpush1.bf16.msra.mxu0 0
    %544 = vmatprep.subr.bf16.mxu0 0
    %545 = vmatpush1.bf16.msra.mxu0 0
    %546 = vmatprep.subr.bf16.mxu0 0
    %547 = vmatpush1.bf16.msra.mxu0 0
    %548 = vmatprep.subr.bf16.mxu0 0
    %549 = vmatpush1.bf16.msra.mxu0 0
    %550 = vmatprep.subr.bf16.mxu0 0
    %551 = vmatpush1.bf16.msra.mxu0 0
    %552 = vmatprep.subr.bf16.mxu0 0
    %553 = vmatpush1.bf16.msra.mxu0 0
    %554 = vmatprep.subr.bf16.mxu0 0
    %555 = vmatpush1.bf16.msra.mxu0 0
    %556 = vmatprep.subr.bf16.mxu0 0
    %557 = vmatpush1.bf16.msra.mxu0 0
    %558 = vmatprep.subr.bf16.mxu0 0
    %559 = vmatpush1.bf16.msra.mxu0 0
    %560 = vmatprep.subr.bf16.mxu0 0
    %561 = vmatpush1.bf16.msra.mxu0 0
    %562 = vmatprep.subr.bf16.mxu0 0
    %563 = vmatpush1.bf16.msra.mxu0 0
    %564 = vmatprep.mubr.bf16.mxu0 0
    %565 = vmatmul.mubr.bf16.gmra.mrb[0].mxu0 %v530
    %v566 = vpop.f32.mrb[0].mxu0
    %v567 = vadd.f32 0.0, %v566
    %v568 = vpop.f32.mrb[0].mxu0
    %v569 = vpop.f32.mrb[0].mxu0
    %v570 = vadd.f32 0.0, %v569
    %v571 = vpop.f32.mrb[0].mxu0
    %572 = vdwg.mxu0
    %v573 = vmax.f32 %v567, 1e-30
    %v574 = vmax.f32 %v570, 1e-30
    %v575 = vrcp.pop %v573
    %v576 = vrcp.pop %v574
    %v577 = vmul.f32 %v468, %v575
    %v578 = vmul.f32 %v519, %v576
    %v579 = vpack.c.bf16 %v578, %v577
    %v580 = vld [vmem:[%s3] sm:$0xf]
    %v581 = vld [vmem:[%s3 + $0x4] sm:$0xf]
    %v582 = vld [vmem:[%s3 + $0x8] sm:$0xf]
    %v583 = vld [vmem:[%s3 + $0xc] sm:$0xf]
    %v584 = vld [vmem:[#allocation5] sm:$0x1]
    %v586 = vlaneseq
    %v587 = vshrl.u32 %v586, 7
    %v588 = vsub.s32 0, %v587
    %v589 = vrot.slane %v584, %v588
    %v595 = vunpack.c.l.b16 %v580
    %v596 = vunpack.c.l.b16 %v581
    %v597 = vunpack.c.l.b16 %v582
    %v598 = vunpack.c.l.b16 %v583
    %v599 = vpack.c.b16 %v596, %v595
    %v600 = vpack.c.b16 %v598, %v597
    %v604 = vsel %vm199, %v579, 0
    %606 = vmatprep.subr.bf16.mxu0 0
    %607 = vmatpush1.bf16.msra.mxu0 %v599
    %608 = vmatprep.subr.bf16.mxu0 0
    %609 = vmatpush1.bf16.msra.mxu0 %v600
    %610 = vmatprep.subr.bf16.mxu0 0
    %611 = vmatpush1.bf16.msra.mxu0 0
    %612 = vmatprep.subr.bf16.mxu0 0
    %613 = vmatpush1.bf16.msra.mxu0 0
    %614 = vmatprep.subr.bf16.mxu0 0
    %615 = vmatpush1.bf16.msra.mxu0 0
    %616 = vmatprep.subr.bf16.mxu0 0
    %617 = vmatpush1.bf16.msra.mxu0 0
    %618 = vmatprep.subr.bf16.mxu0 0
    %619 = vmatpush1.bf16.msra.mxu0 0
    %620 = vmatprep.subr.bf16.mxu0 0
    %621 = vmatpush1.bf16.msra.mxu0 0
    %622 = vmatprep.subr.bf16.mxu0 0
    %623 = vmatpush1.bf16.msra.mxu0 0
    %624 = vmatprep.subr.bf16.mxu0 0
    %625 = vmatpush1.bf16.msra.mxu0 0
    %626 = vmatprep.subr.bf16.mxu0 0
    %627 = vmatpush1.bf16.msra.mxu0 0
    %628 = vmatprep.subr.bf16.mxu0 0
    %629 = vmatpush1.bf16.msra.mxu0 0
    %630 = vmatprep.subr.bf16.mxu0 0
    %631 = vmatpush1.bf16.msra.mxu0 0
    %632 = vmatprep.subr.bf16.mxu0 0
    %633 = vmatpush1.bf16.msra.mxu0 0
    %634 = vmatprep.subr.bf16.mxu0 0
    %635 = vmatpush1.bf16.msra.mxu0 0
    %636 = vmatprep.subr.bf16.mxu0 0
    %637 = vmatpush1.bf16.msra.mxu0 0
    %638 = vmatprep.mubr.bf16.mxu0 0
    %639 = vmatmul.mubr.bf16.gmra.mrb[0].mxu0 %v604
    %v640 = vpop.f32.mrb[0].mxu0
    %v641 = vadd.f32 %v589, %v640
    %v642 = vpop.f32.mrb[0].mxu0
    %v643 = vpop.f32.mrb[0].mxu0
    %v644 = vadd.f32 %v589, %v643
    %v645 = vpop.f32.mrb[0].mxu0
    %646 = vdwg.mxu0
    %v647 = vadd.f32 %v641, %v174
    %v648 = vadd.f32 %v644, %v175
    %v649 = vld [vmem:[#allocation7] sm:$0x1]
    %v650 = vld [vmem:[#allocation8] sm:$0x1]
    %v651 = vsel %vm199, %v647, 0.0
    %652 = vadd.xlane.f32.xlu0 %v651
    %v653 = vpop.xlane.xlu0 %652
    %v654 = vsel %vm199, %v648, 0.0
    %655 = vadd.xlane.f32.xlu0 %v654
    %v656 = vpop.xlane.xlu0 %655
    %v657 = vrcp.pop 32.0
    %v658 = vmul.f32 %v653, %v657
    %v659 = vmul.f32 %v656, %v657
    %v660 = vsub.f32 %v647, %v658
    %v661 = vsub.f32 %v648, %v659
    %v662 = vmul.f32 %v660, %v660
    %v663 = vmul.f32 %v661, %v661
    %v664 = vsel %vm199, %v662, 0.0
    %665 = vadd.xlane.f32.xlu0 %v664
    %v666 = vpop.xlane.xlu0 %665
    %v667 = vsel %vm199, %v663, 0.0
    %668 = vadd.xlane.f32.xlu0 %v667
    %v669 = vpop.xlane.xlu0 %668
    %v670 = vmul.f32 %v666, %v657
    %v671 = vmul.f32 %v669, %v657
    %v672 = vadd.f32 %v670, 1e-05
    %v673 = vadd.f32 %v671, 1e-05
    %v674 = vrsqrt.pop %v672
    %v675 = vrsqrt.pop %v673
    %v676 = vmul.f32 %v660, %v674
    %v677 = vmul.f32 %v661, %v675
    %v679 = vlaneseq
    %v680 = vshrl.u32 %v679, 7
    %v681 = vsub.s32 0, %v680
    %v682 = vrot.slane %v649, %v681
    %v684 = vmul.f32 %v676, %v682
    %v685 = vmul.f32 %v677, %v682
    %v687 = vlaneseq
    %v688 = vshrl.u32 %v687, 7
    %v689 = vsub.s32 0, %v688
    %v690 = vrot.slane %v650, %v689
    %v692 = vadd.f32 %v684, %v690
    %v693 = vadd.f32 %v685, %v690
    %v694 = vpack.c.bf16 %v693, %v692
    %v695 = vld [vmem:[#allocation10] sm:$0xf]
    %v696 = vld [vmem:[#allocation10 + $0x4] sm:$0xf]
    %v697 = vld [vmem:[#allocation10 + $0x8] sm:$0xf]
    %v698 = vld [vmem:[#allocation10 + $0xc] sm:$0xf]
    %v699 = vld [vmem:[#allocation11] sm:$0x1]
    %v701 = vlaneseq
    %v702 = vshrl.u32 %v701, 7
    %v703 = vsub.s32 0, %v702
    %v704 = vrot.slane %v699, %v703
    %v710 = vunpack.c.l.b16 %v695
    %v711 = vunpack.c.l.b16 %v696
    %v712 = vunpack.c.l.b16 %v697
    %v713 = vunpack.c.l.b16 %v698
    %v714 = vpack.c.b16 %v711, %v710
    %v715 = vpack.c.b16 %v713, %v712
    %v719 = vsel %vm199, %v694, 0
    %721 = vmatprep.subr.bf16.mxu0 0
    %722 = vmatpush1.bf16.msra.mxu0 %v714
    %723 = vmatprep.subr.bf16.mxu0 0
    %724 = vmatpush1.bf16.msra.mxu0 %v715
    %725 = vmatprep.subr.bf16.mxu0 0
    %726 = vmatpush1.bf16.msra.mxu0 0
    %727 = vmatprep.subr.bf16.mxu0 0
    %728 = vmatpush1.bf16.msra.mxu0 0
    %729 = vmatprep.subr.bf16.mxu0 0
    %730 = vmatpush1.bf16.msra.mxu0 0
    %731 = vmatprep.subr.bf16.mxu0 0
    %732 = vmatpush1.bf16.msra.mxu0 0
    %733 = vmatprep.subr.bf16.mxu0 0
    %734 = vmatpush1.bf16.msra.mxu0 0
    %735 = vmatprep.subr.bf16.mxu0 0
    %736 = vmatpush1.bf16.msra.mxu0 0
    %737 = vmatprep.subr.bf16.mxu0 0
    %738 = vmatpush1.bf16.msra.mxu0 0
    %739 = vmatprep.subr.bf16.mxu0 0
    %740 = vmatpush1.bf16.msra.mxu0 0
    %741 = vmatprep.subr.bf16.mxu0 0
    %742 = vmatpush1.bf16.msra.mxu0 0
    %743 = vmatprep.subr.bf16.mxu0 0
    %744 = vmatpush1.bf16.msra.mxu0 0
    %745 = vmatprep.subr.bf16.mxu0 0
    %746 = vmatpush1.bf16.msra.mxu0 0
    %747 = vmatprep.subr.bf16.mxu0 0
    %748 = vmatpush1.bf16.msra.mxu0 0
    %749 = vmatprep.subr.bf16.mxu0 0
    %750 = vmatpush1.bf16.msra.mxu0 0
    %751 = vmatprep.subr.bf16.mxu0 0
    %752 = vmatpush1.bf16.msra.mxu0 0
    %753 = vmatprep.mubr.bf16.mxu0 0
    %754 = vmatmul.mubr.bf16.gmra.mrb[0].mxu0 %v719
    %v755 = vpop.f32.mrb[0].mxu0
    %v756 = vadd.f32 %v704, %v755
    %v757 = vpop.f32.mrb[0].mxu0
    %v758 = vpop.f32.mrb[0].mxu0
    %v759 = vadd.f32 %v704, %v758
    %v760 = vpop.f32.mrb[0].mxu0
    %761 = vdwg.mxu0
    %v762 = vmax.f32 %v756, 0.0
    %v763 = vmax.f32 %v759, 0.0
    %v764 = vpack.c.bf16 %v763, %v762
    %v765 = vld [vmem:[%s9] sm:$0xf]
    %v766 = vld [vmem:[%s9 + $0x4] sm:$0xf]
    %v767 = vld [vmem:[%s9 + $0x8] sm:$0xf]
    %v768 = vld [vmem:[%s9 + $0xc] sm:$0xf]
    %v769 = vld [vmem:[%s9 + $0x10] sm:$0xf]
    %v770 = vld [vmem:[%s9 + $0x14] sm:$0xf]
    %v771 = vld [vmem:[%s9 + $0x18] sm:$0xf]
    %v772 = vld [vmem:[%s9 + $0x1c] sm:$0xf]
    %v773 = vld [vmem:[#allocation13] sm:$0x1]
    %v775 = vlaneseq
    %v776 = vshrl.u32 %v775, 7
    %v777 = vsub.s32 0, %v776
    %v778 = vrot.slane %v773, %v777
    %v788 = vunpack.c.l.b16 %v765
    %v789 = vunpack.c.l.b16 %v766
    %v790 = vunpack.c.l.b16 %v767
    %v791 = vunpack.c.l.b16 %v768
    %v792 = vunpack.c.l.b16 %v769
    %v793 = vunpack.c.l.b16 %v770
    %v794 = vunpack.c.l.b16 %v771
    %v795 = vunpack.c.l.b16 %v772
    %v796 = vpack.c.b16 %v789, %v788
    %v797 = vpack.c.b16 %v791, %v790
    %v798 = vpack.c.b16 %v793, %v792
    %v799 = vpack.c.b16 %v795, %v794
    %vm804 = vcmask 523264
    %v806 = vsel %vm804, %v764, 0
    %808 = vmatprep.subr.bf16.mxu0 0
    %809 = vmatpush1.bf16.msra.mxu0 %v796
    %810 = vmatprep.subr.bf16.mxu0 0
    %811 = vmatpush1.bf16.msra.mxu0 %v797
    %812 = vmatprep.subr.bf16.mxu0 0
    %813 = vmatpush1.bf16.msra.mxu0 %v798
    %814 = vmatprep.subr.bf16.mxu0 0
    %815 = vmatpush1.bf16.msra.mxu0 %v799
    %816 = vmatprep.subr.bf16.mxu0 0
    %817 = vmatpush1.bf16.msra.mxu0 0
    %818 = vmatprep.subr.bf16.mxu0 0
    %819 = vmatpush1.bf16.msra.mxu0 0
    %820 = vmatprep.subr.bf16.mxu0 0
    %821 = vmatpush1.bf16.msra.mxu0 0
    %822 = vmatprep.subr.bf16.mxu0 0
    %823 = vmatpush1.bf16.msra.mxu0 0
    %824 = vmatprep.subr.bf16.mxu0 0
    %825 = vmatpush1.bf16.msra.mxu0 0
    %826 = vmatprep.subr.bf16.mxu0 0
    %827 = vmatpush1.bf16.msra.mxu0 0
    %828 = vmatprep.subr.bf16.mxu0 0
    %829 = vmatpush1.bf16.msra.mxu0 0
    %830 = vmatprep.subr.bf16.mxu0 0
    %831 = vmatpush1.bf16.msra.mxu0 0
    %832 = vmatprep.subr.bf16.mxu0 0
    %833 = vmatpush1.bf16.msra.mxu0 0
    %834 = vmatprep.subr.bf16.mxu0 0
    %835 = vmatpush1.bf16.msra.mxu0 0
    %836 = vmatprep.subr.bf16.mxu0 0
    %837 = vmatpush1.bf16.msra.mxu0 0
    %838 = vmatprep.subr.bf16.mxu0 0
    %839 = vmatpush1.bf16.msra.mxu0 0
    %840 = vmatprep.mubr.bf16.mxu0 0
    %841 = vmatmul.mubr.bf16.gmra.mrb[0].mxu0 %v806
    %v842 = vpop.f32.mrb[0].mxu0
    %v843 = vadd.f32 %v778, %v842
    %v844 = vpop.f32.mrb[0].mxu0
    %v845 = vpop.f32.mrb[0].mxu0
    %v846 = vadd.f32 %v778, %v845
    %v847 = vpop.f32.mrb[0].mxu0
    %848 = vdwg.mxu0
    %v849 = vadd.f32 %v843, %v692
    %v850 = vadd.f32 %v846, %v693
    %v851 = vld [vmem:[#allocation14] sm:$0x1]
    %v852 = vld [vmem:[#allocation16] sm:$0x1]
    %v853 = vsel %vm199, %v849, 0.0
    %854 = vadd.xlane.f32.xlu0 %v853
    %v855 = vpop.xlane.xlu0 %854
    %v856 = vsel %vm199, %v850, 0.0
    %857 = vadd.xlane.f32.xlu0 %v856
    %v858 = vpop.xlane.xlu0 %857
    %v859 = vmul.f32 %v855, %v657
    %v860 = vmul.f32 %v858, %v657
    %v861 = vsub.f32 %v849, %v859
    %v862 = vsub.f32 %v850, %v860
    %v863 = vmul.f32 %v861, %v861
    %v864 = vmul.f32 %v862, %v862
    %v865 = vsel %vm199, %v863, 0.0
    %866 = vadd.xlane.f32.xlu0 %v865
    %v867 = vpop.xlane.xlu0 %866
    %v868 = vsel %vm199, %v864, 0.0
    %869 = vadd.xlane.f32.xlu0 %v868
    %v870 = vpop.xlane.xlu0 %869
    %v871 = vmul.f32 %v867, %v657
    %v872 = vmul.f32 %v870, %v657
    %v873 = vadd.f32 %v871, 1e-05
    %v874 = vadd.f32 %v872, 1e-05
    %v875 = vrsqrt.pop %v873
    %v876 = vrsqrt.pop %v874
    %v877 = vmul.f32 %v861, %v875
    %v878 = vmul.f32 %v862, %v876
    %v880 = vlaneseq
    %v881 = vshrl.u32 %v880, 7
    %v882 = vsub.s32 0, %v881
    %v883 = vrot.slane %v851, %v882
    %v885 = vmul.f32 %v877, %v883
    %v886 = vmul.f32 %v878, %v883
    %v888 = vlaneseq
    %v889 = vshrl.u32 %v888, 7
    %v890 = vsub.s32 0, %v889
    %v891 = vrot.slane %v852, %v890
    %v893 = vadd.f32 %v885, %v891
    %v894 = vadd.f32 %v886, %v891
    %v895 = vpack.c.bf16 %v894, %v893
    %s896 = scalar_lea.vmem %s2, 16
    %v897 = vld [vmem:[%s896] sm:$0xf]
    %v898 = vld [vmem:[%s896 + $0x4] sm:$0xf]
    %v899 = vld [vmem:[%s896 + $0x8] sm:$0xf]
    %v900 = vld [vmem:[%s896 + $0xc] sm:$0xf]
    %v905 = vunpack.c.l.b16 %v897
    %v906 = vunpack.c.l.b16 %v898
    %v907 = vunpack.c.l.b16 %v899
    %v908 = vunpack.c.l.b16 %v900
    %v909 = vpack.c.b16 %v906, %v905
    %v910 = vpack.c.b16 %v908, %v907
    %v914 = vsel %vm199, %v895, 0
    %916 = vmatprep.subr.bf16.mxu0 0
    %917 = vmatpush1.bf16.msra.mxu0 %v909
    %918 = vmatprep.subr.bf16.mxu0 0
    %919 = vmatpush1.bf16.msra.mxu0 %v910
    %920 = vmatprep.subr.bf16.mxu0 0
    %921 = vmatpush1.bf16.msra.mxu0 0
    %922 = vmatprep.subr.bf16.mxu0 0
    %923 = vmatpush1.bf16.msra.mxu0 0
    %924 = vmatprep.subr.bf16.mxu0 0
    %925 = vmatpush1.bf16.msra.mxu0 0
    %926 = vmatprep.subr.bf16.mxu0 0
    %927 = vmatpush1.bf16.msra.mxu0 0
    %928 = vmatprep.subr.bf16.mxu0 0
    %929 = vmatpush1.bf16.msra.mxu0 0
    %930 = vmatprep.subr.bf16.mxu0 0
    %931 = vmatpush1.bf16.msra.mxu0 0
    %932 = vmatprep.subr.bf16.mxu0 0
    %933 = vmatpush1.bf16.msra.mxu0 0
    %934 = vmatprep.subr.bf16.mxu0 0
    %935 = vmatpush1.bf16.msra.mxu0 0
    %936 = vmatprep.subr.bf16.mxu0 0
    %937 = vmatpush1.bf16.msra.mxu0 0
    %938 = vmatprep.subr.bf16.mxu0 0
    %939 = vmatpush1.bf16.msra.mxu0 0
    %940 = vmatprep.subr.bf16.mxu0 0
    %941 = vmatpush1.bf16.msra.mxu0 0
    %942 = vmatprep.subr.bf16.mxu0 0
    %943 = vmatpush1.bf16.msra.mxu0 0
    %944 = vmatprep.subr.bf16.mxu0 0
    %945 = vmatpush1.bf16.msra.mxu0 0
    %946 = vmatprep.subr.bf16.mxu0 0
    %947 = vmatpush1.bf16.msra.mxu0 0
    %948 = vmatprep.mubr.bf16.mxu0 0
    %949 = vmatmul.mubr.bf16.gmra.mrb[0].mxu0 %v914
    %v950 = vpop.f32.mrb[0].mxu0
    %v951 = vadd.f32 0.0, %v950
    %v952 = vpop.f32.mrb[0].mxu0
    %v953 = vpop.f32.mrb[0].mxu0
    %v954 = vadd.f32 0.0, %v953
    %v955 = vpop.f32.mrb[0].mxu0
    %956 = vdwg.mxu0
    %v957 = vpack.c.bf16 %v951, %v951
    %v958 = vpack.c.bf16 %v954, %v954
    %v959 = vmul.f32 %v951, %v251
    %v960 = vmul.f32 %v951, %v253
    %v961 = vmul.f32 %v951, %v255
    %v962 = vmul.f32 %v951, %v257
    %v963 = vmul.f32 %v954, %v251
    %v964 = vmul.f32 %v954, %v253
    %v965 = vmul.f32 %v954, %v255
    %v966 = vmul.f32 %v954, %v257
    %v967 = vpack.c.bf16 %v960, %v959
    %v968 = vpack.c.bf16 %v962, %v961
    %v969 = vpack.c.bf16 %v964, %v963
    %v970 = vpack.c.bf16 %v966, %v965
    %v971 = vmul.f32 %v951, %v275
    %v972 = vmul.f32 %v951, %v277
    %v973 = vmul.f32 %v951, %v279
    %v974 = vmul.f32 %v951, %v281
    %v975 = vmul.f32 %v954, %v275
    %v976 = vmul.f32 %v954, %v277
    %v977 = vmul.f32 %v954, %v279
    %v978 = vmul.f32 %v954, %v281
    %v979 = vpack.c.bf16 %v972, %v971
    %v980 = vpack.c.bf16 %v974, %v973
    %v981 = vpack.c.bf16 %v976, %v975
    %v982 = vpack.c.bf16 %v978, %v977
    %985 = vrot.lane.b32.xlu0 %v967, 96
    %v986 = vpop.permute.xlu0 %985
    %987 = vrot.lane.b32.xlu0 %v968, 96
    %v988 = vpop.permute.xlu0 %987
    %v990 = vsel %vm199, %v957, 0
    %v993 = vsel %vm199, %v986, 0
    %v996 = vsel %vm199, %v988, 0
    %998 = vmatprep.subr.bf16.mxu0 0
    %999 = vmatpush1.bf16.xpose.msra.mxu0 %v993
    %1000 = vmatprep.subr.bf16.mxu0 0
    %1001 = vmatpush1.bf16.xpose.msra.mxu0 %v996
    %1002 = vmatprep.subr.bf16.mxu0 0
    %1003 = vmatpush1.bf16.xpose.msra.mxu0 0
    %1004 = vmatprep.subr.bf16.mxu0 0
    %1005 = vmatpush1.bf16.xpose.msra.mxu0 0
    %1006 = vmatprep.subr.bf16.mxu0 0
    %1007 = vmatpush1.bf16.xpose.msra.mxu0 0
    %1008 = vmatprep.subr.bf16.mxu0 0
    %1009 = vmatpush1.bf16.xpose.msra.mxu0 0
    %1010 = vmatprep.subr.bf16.mxu0 0
    %1011 = vmatpush1.bf16.xpose.msra.mxu0 0
    %1012 = vmatprep.subr.bf16.mxu0 0
    %1013 = vmatpush1.bf16.xpose.msra.mxu0 0
    %1014 = vmatprep.subr.bf16.mxu0 0
    %1015 = vmatpush1.bf16.xpose.msra.mxu0 0
    %1016 = vmatprep.subr.bf16.mxu0 0
    %1017 = vmatpush1.bf16.xpose.msra.mxu0 0
    %1018 = vmatprep.subr.bf16.mxu0 0
    %1019 = vmatpush1.bf16.xpose.msra.mxu0 0
    %1020 = vmatprep.subr.bf16.mxu0 0
    %1021 = vmatpush1.bf16.xpose.msra.mxu0 0
    %1022 = vmatprep.subr.bf16.mxu0 0
    %1023 = vmatpush1.bf16.xpose.msra.mxu0 0
    %1024 = vmatprep.subr.bf16.mxu0 0
    %1025 = vmatpush1.bf16.xpose.msra.mxu0 0
    %1026 = vmatprep.subr.bf16.mxu0 0
    %1027 = vmatpush1.bf16.xpose.msra.mxu0 0
    %1028 = vmatprep.subr.bf16.mxu0 0
    %1029 = vmatpush1.bf16.xpose.msra.mxu0 0
    %1030 = vmatprep.mubr.bf16.mxu0 0
    %1031 = vmatmul.mubr.bf16.gmra.mrb[0].mxu0 %v990
    %v1032 = vpop.f32.mrb[0].mxu0
    %v1033 = vadd.f32 0.0, %v1032
    %v1034 = vpop.f32.mrb[0].mxu0
    %v1035 = vpop.f32.mrb[0].mxu0
    %v1036 = vpop.f32.mrb[0].mxu0
    %1037 = vdwg.mxu0
    %1040 = vrot.lane.b32.xlu0 %v969, 96
    %v1041 = vpop.permute.xlu0 %1040
    %1042 = vrot.lane.b32.xlu0 %v970, 96
    %v1043 = vpop.permute.xlu0 %1042
    %v1045 = vsel %vm199, %v958, 0
    %v1048 = vsel %vm199, %v1041, 0
    %v1051 = vsel %vm199, %v1043, 0
    %1053 = vmatprep.subr.bf16.mxu0 0
    %1054 = vmatpush1.bf16.xpose.msra.mxu0 %v1048
    %1055 = vmatprep.subr.bf16.mxu0 0
    %1056 = vmatpush1.bf16.xpose.msra.mxu0 %v1051
    %1057 = vmatprep.subr.bf16.mxu0 0
    %1058 = vmatpush1.bf16.xpose.msra.mxu0 0
    %1059 = vmatprep.subr.bf16.mxu0 0
    %1060 = vmatpush1.bf16.xpose.msra.mxu0 0
    %1061 = vmatprep.subr.bf16.mxu0 0
    %1062 = vmatpush1.bf16.xpose.msra.mxu0 0
    %1063 = vmatprep.subr.bf16.mxu0 0
    %1064 = vmatpush1.bf16.xpose.msra.mxu0 0
    %1065 = vmatprep.subr.bf16.mxu0 0
    %1066 = vmatpush1.bf16.xpose.msra.mxu0 0
    %1067 = vmatprep.subr.bf16.mxu0 0
    %1068 = vmatpush1.bf16.xpose.msra.mxu0 0
    %1069 = vmatprep.subr.bf16.mxu0 0
    %1070 = vmatpush1.bf16.xpose.msra.mxu0 0
    %1071 = vmatprep.subr.bf16.mxu0 0
    %1072 = vmatpush1.bf16.xpose.msra.mxu0 0
    %1073 = vmatprep.subr.bf16.mxu0 0
    %1074 = vmatpush1.bf16.xpose.msra.mxu0 0
    %1075 = vmatprep.subr.bf16.mxu0 0
    %1076 = vmatpush1.bf16.xpose.msra.mxu0 0
    %1077 = vmatprep.subr.bf16.mxu0 0
    %1078 = vmatpush1.bf16.xpose.msra.mxu0 0
    %1079 = vmatprep.subr.bf16.mxu0 0
    %1080 = vmatpush1.bf16.xpose.msra.mxu0 0
    %1081 = vmatprep.subr.bf16.mxu0 0
    %1082 = vmatpush1.bf16.xpose.msra.mxu0 0
    %1083 = vmatprep.subr.bf16.mxu0 0
    %1084 = vmatpush1.bf16.xpose.msra.mxu0 0
    %1085 = vmatprep.mubr.bf16.mxu0 0
    %1086 = vmatmul.mubr.bf16.gmra.mrb[0].mxu0 %v1045
    %v1087 = vpop.f32.mrb[0].mxu0
    %v1088 = vadd.f32 0.0, %v1087
    %v1089 = vpop.f32.mrb[0].mxu0
    %v1090 = vpop.f32.mrb[0].mxu0
    %v1091 = vpop.f32.mrb[0].mxu0
    %1092 = vdwg.mxu0
    %v1093 = vsel %vm199, %v1033, -inf
    %1094 = vmax.xlane.f32.xlu0 %v1093
    %v1095 = vpop.xlane.xlu0 %1094
    %v1096 = vsel %vm199, %v1088, -inf
    %1097 = vmax.xlane.f32.xlu0 %v1096
    %v1098 = vpop.xlane.xlu0 %1097
    %v1099 = vsub.f32 %v1033, %v1095
    %v1100 = vsub.f32 %v1088, %v1098
    %v1101 = vmul.f32 %v1099, 1.442695
    %v1102 = vpow.pop %v1101
    %v1103 = vmul.f32 %v1100, 1.442695
    %v1104 = vpow.pop %v1103
    %v1105 = vpack.c.bf16 %v1102, %v1102
    %v1106 = vpack.c.bf16 %v1104, %v1104
    %1109 = vrot.lane.b32.xlu0 %v979, 64
    %v1110 = vpop.permute.xlu0 %1109
    %1111 = vrot.lane.b32.xlu0 %v980, 64
    %v1112 = vpop.permute.xlu0 %1111
    %v1116 = vsel %vm199, %v1105, 0
    %1118 = vmatprep.subr.bf16.mxu0 0
    %1119 = vmatpush1.bf16.msra.mxu0 %v1110
    %1120 = vmatprep.subr.bf16.mxu0 0
    %1121 = vmatpush1.bf16.msra.mxu0 %v1112
    %1122 = vmatprep.subr.bf16.mxu0 0
    %1123 = vmatpush1.bf16.msra.mxu0 0
    %1124 = vmatprep.subr.bf16.mxu0 0
    %1125 = vmatpush1.bf16.msra.mxu0 0
    %1126 = vmatprep.subr.bf16.mxu0 0
    %1127 = vmatpush1.bf16.msra.mxu0 0
    %1128 = vmatprep.subr.bf16.mxu0 0
    %1129 = vmatpush1.bf16.msra.mxu0 0
    %1130 = vmatprep.subr.bf16.mxu0 0
    %1131 = vmatpush1.bf16.msra.mxu0 0
    %1132 = vmatprep.subr.bf16.mxu0 0
    %1133 = vmatpush1.bf16.msra.mxu0 0
    %1134 = vmatprep.subr.bf16.mxu0 0
    %1135 = vmatpush1.bf16.msra.mxu0 0
    %1136 = vmatprep.subr.bf16.mxu0 0
    %1137 = vmatpush1.bf16.msra.mxu0 0
    %1138 = vmatprep.subr.bf16.mxu0 0
    %1139 = vmatpush1.bf16.msra.mxu0 0
    %1140 = vmatprep.subr.bf16.mxu0 0
    %1141 = vmatpush1.bf16.msra.mxu0 0
    %1142 = vmatprep.subr.bf16.mxu0 0
    %1143 = vmatpush1.bf16.msra.mxu0 0
    %1144 = vmatprep.subr.bf16.mxu0 0
    %1145 = vmatpush1.bf16.msra.mxu0 0
    %1146 = vmatprep.subr.bf16.mxu0 0
    %1147 = vmatpush1.bf16.msra.mxu0 0
    %1148 = vmatprep.subr.bf16.mxu0 0
    %1149 = vmatpush1.bf16.msra.mxu0 0
    %1150 = vmatprep.mubr.bf16.mxu0 0
    %1151 = vmatmul.mubr.bf16.gmra.mrb[0].mxu0 %v1116
    %v1152 = vpop.f32.mrb[0].mxu0
    %v1153 = vadd.f32 0.0, %v1152
    %v1154 = vpop.f32.mrb[0].mxu0
    %v1155 = vpop.f32.mrb[0].mxu0
    %v1156 = vpop.f32.mrb[0].mxu0
    %1157 = vdwg.mxu0
    %1160 = vrot.lane.b32.xlu0 %v981, 64
    %v1161 = vpop.permute.xlu0 %1160
    %1162 = vrot.lane.b32.xlu0 %v982, 64
    %v1163 = vpop.permute.xlu0 %1162
    %v1167 = vsel %vm199, %v1106, 0
    %1169 = vmatprep.subr.bf16.mxu0 0
    %1170 = vmatpush1.bf16.msra.mxu0 %v1161
    %1171 = vmatprep.subr.bf16.mxu0 0
    %1172 = vmatpush1.bf16.msra.mxu0 %v1163
    %1173 = vmatprep.subr.bf16.mxu0 0
    %1174 = vmatpush1.bf16.msra.mxu0 0
    %1175 = vmatprep.subr.bf16.mxu0 0
    %1176 = vmatpush1.bf16.msra.mxu0 0
    %1177 = vmatprep.subr.bf16.mxu0 0
    %1178 = vmatpush1.bf16.msra.mxu0 0
    %1179 = vmatprep.subr.bf16.mxu0 0
    %1180 = vmatpush1.bf16.msra.mxu0 0
    %1181 = vmatprep.subr.bf16.mxu0 0
    %1182 = vmatpush1.bf16.msra.mxu0 0
    %1183 = vmatprep.subr.bf16.mxu0 0
    %1184 = vmatpush1.bf16.msra.mxu0 0
    %1185 = vmatprep.subr.bf16.mxu0 0
    %1186 = vmatpush1.bf16.msra.mxu0 0
    %1187 = vmatprep.subr.bf16.mxu0 0
    %1188 = vmatpush1.bf16.msra.mxu0 0
    %1189 = vmatprep.subr.bf16.mxu0 0
    %1190 = vmatpush1.bf16.msra.mxu0 0
    %1191 = vmatprep.subr.bf16.mxu0 0
    %1192 = vmatpush1.bf16.msra.mxu0 0
    %1193 = vmatprep.subr.bf16.mxu0 0
    %1194 = vmatpush1.bf16.msra.mxu0 0
    %1195 = vmatprep.subr.bf16.mxu0 0
    %1196 = vmatpush1.bf16.msra.mxu0 0
    %1197 = vmatprep.subr.bf16.mxu0 0
    %1198 = vmatpush1.bf16.msra.mxu0 0
    %1199 = vmatprep.subr.bf16.mxu0 0
    %1200 = vmatpush1.bf16.msra.mxu0 0
    %1201 = vmatprep.mubr.bf16.mxu0 0
    %1202 = vmatmul.mubr.bf16.gmra.mrb[0].mxu0 %v1167
    %v1203 = vpop.f32.mrb[0].mxu0
    %v1204 = vadd.f32 0.0, %v1203
    %v1205 = vpop.f32.mrb[0].mxu0
    %v1206 = vpop.f32.mrb[0].mxu0
    %v1207 = vpop.f32.mrb[0].mxu0
    %1208 = vdwg.mxu0
    %v1211 = vunpack.c.l.b16 %v1105
    %v1212 = vunpack.c.l.b16 %v1106
    %v1213 = vpack.c.b16 %v1212, %v1211
    %v1215 = vsel %vm199, %v1213, 0
    %1217 = vmatprep.subr.bf16.mxu0 0
    %1218 = vmatpush1.bf16.msra.mxu0 %v180
    %1219 = vmatprep.subr.bf16.mxu0 0
    %1220 = vmatpush1.bf16.msra.mxu0 %v181
    %1221 = vmatprep.subr.bf16.mxu0 0
    %1222 = vmatpush1.bf16.msra.mxu0 0
    %1223 = vmatprep.subr.bf16.mxu0 0
    %1224 = vmatpush1.bf16.msra.mxu0 0
    %1225 = vmatprep.subr.bf16.mxu0 0
    %1226 = vmatpush1.bf16.msra.mxu0 0
    %1227 = vmatprep.subr.bf16.mxu0 0
    %1228 = vmatpush1.bf16.msra.mxu0 0
    %1229 = vmatprep.subr.bf16.mxu0 0
    %1230 = vmatpush1.bf16.msra.mxu0 0
    %1231 = vmatprep.subr.bf16.mxu0 0
    %1232 = vmatpush1.bf16.msra.mxu0 0
    %1233 = vmatprep.subr.bf16.mxu0 0
    %1234 = vmatpush1.bf16.msra.mxu0 0
    %1235 = vmatprep.subr.bf16.mxu0 0
    %1236 = vmatpush1.bf16.msra.mxu0 0
    %1237 = vmatprep.subr.bf16.mxu0 0
    %1238 = vmatpush1.bf16.msra.mxu0 0
    %1239 = vmatprep.subr.bf16.mxu0 0
    %1240 = vmatpush1.bf16.msra.mxu0 0
    %1241 = vmatprep.subr.bf16.mxu0 0
    %1242 = vmatpush1.bf16.msra.mxu0 0
    %1243 = vmatprep.subr.bf16.mxu0 0
    %1244 = vmatpush1.bf16.msra.mxu0 0
    %1245 = vmatprep.subr.bf16.mxu0 0
    %1246 = vmatpush1.bf16.msra.mxu0 0
    %1247 = vmatprep.subr.bf16.mxu0 0
    %1248 = vmatpush1.bf16.msra.mxu0 0
    %1249 = vmatprep.mubr.bf16.mxu0 0
    %1250 = vmatmul.mubr.bf16.gmra.mrb[0].mxu0 %v1215
    %v1251 = vpop.f32.mrb[0].mxu0
    %v1252 = vadd.f32 0.0, %v1251
    %v1253 = vpop.f32.mrb[0].mxu0
    %v1254 = vpop.f32.mrb[0].mxu0
    %v1255 = vadd.f32 0.0, %v1254
    %v1256 = vpop.f32.mrb[0].mxu0
    %1257 = vdwg.mxu0
    %v1258 = vmax.f32 %v1252, 1e-30
    %v1259 = vmax.f32 %v1255, 1e-30
    %v1260 = vrcp.pop %v1258
    %v1261 = vrcp.pop %v1259
    %v1262 = vmul.f32 %v1153, %v1260
    %v1263 = vmul.f32 %v1204, %v1261
    %v1264 = vpack.c.bf16 %v1263, %v1262
    %s1265 = scalar_lea.vmem %s3, 16
    %v1266 = vld [vmem:[%s1265] sm:$0xf]
    %v1267 = vld [vmem:[%s1265 + $0x4] sm:$0xf]
    %v1268 = vld [vmem:[%s1265 + $0x8] sm:$0xf]
    %v1269 = vld [vmem:[%s1265 + $0xc] sm:$0xf]
    %s1270 = scalar_lea.vmem [#allocation5], 1
    %v1271 = vld [vmem:[%s1270] sm:$0x1]
    %v1273 = vlaneseq
    %v1274 = vshrl.u32 %v1273, 7
    %v1275 = vsub.s32 0, %v1274
    %v1276 = vrot.slane %v1271, %v1275
    %v1282 = vunpack.c.l.b16 %v1266
    %v1283 = vunpack.c.l.b16 %v1267
    %v1284 = vunpack.c.l.b16 %v1268
    %v1285 = vunpack.c.l.b16 %v1269
    %v1286 = vpack.c.b16 %v1283, %v1282
    %v1287 = vpack.c.b16 %v1285, %v1284
    %v1291 = vsel %vm199, %v1264, 0
    %1293 = vmatprep.subr.bf16.mxu0 0
    %1294 = vmatpush1.bf16.msra.mxu0 %v1286
    %1295 = vmatprep.subr.bf16.mxu0 0
    %1296 = vmatpush1.bf16.msra.mxu0 %v1287
    %1297 = vmatprep.subr.bf16.mxu0 0
    %1298 = vmatpush1.bf16.msra.mxu0 0
    %1299 = vmatprep.subr.bf16.mxu0 0
    %1300 = vmatpush1.bf16.msra.mxu0 0
    %1301 = vmatprep.subr.bf16.mxu0 0
    %1302 = vmatpush1.bf16.msra.mxu0 0
    %1303 = vmatprep.subr.bf16.mxu0 0
    %1304 = vmatpush1.bf16.msra.mxu0 0
    %1305 = vmatprep.subr.bf16.mxu0 0
    %1306 = vmatpush1.bf16.msra.mxu0 0
    %1307 = vmatprep.subr.bf16.mxu0 0
    %1308 = vmatpush1.bf16.msra.mxu0 0
    %1309 = vmatprep.subr.bf16.mxu0 0
    %1310 = vmatpush1.bf16.msra.mxu0 0
    %1311 = vmatprep.subr.bf16.mxu0 0
    %1312 = vmatpush1.bf16.msra.mxu0 0
    %1313 = vmatprep.subr.bf16.mxu0 0
    %1314 = vmatpush1.bf16.msra.mxu0 0
    %1315 = vmatprep.subr.bf16.mxu0 0
    %1316 = vmatpush1.bf16.msra.mxu0 0
    %1317 = vmatprep.subr.bf16.mxu0 0
    %1318 = vmatpush1.bf16.msra.mxu0 0
    %1319 = vmatprep.subr.bf16.mxu0 0
    %1320 = vmatpush1.bf16.msra.mxu0 0
    %1321 = vmatprep.subr.bf16.mxu0 0
    %1322 = vmatpush1.bf16.msra.mxu0 0
    %1323 = vmatprep.subr.bf16.mxu0 0
    %1324 = vmatpush1.bf16.msra.mxu0 0
    %1325 = vmatprep.mubr.bf16.mxu0 0
    %1326 = vmatmul.mubr.bf16.gmra.mrb[0].mxu0 %v1291
    %v1327 = vpop.f32.mrb[0].mxu0
    %v1328 = vadd.f32 %v1276, %v1327
    %v1329 = vpop.f32.mrb[0].mxu0
    %v1330 = vpop.f32.mrb[0].mxu0
    %v1331 = vadd.f32 %v1276, %v1330
    %v1332 = vpop.f32.mrb[0].mxu0
    %1333 = vdwg.mxu0
    %v1334 = vadd.f32 %v1328, %v893
    %v1335 = vadd.f32 %v1331, %v894
    %s1336 = scalar_lea.vmem [#allocation7], 1
    %v1337 = vld [vmem:[%s1336] sm:$0x1]
    %s1338 = scalar_lea.vmem [#allocation8], 1
    %v1339 = vld [vmem:[%s1338] sm:$0x1]
    %v1340 = vsel %vm199, %v1334, 0.0
    %1341 = vadd.xlane.f32.xlu0 %v1340
    %v1342 = vpop.xlane.xlu0 %1341
    %v1343 = vsel %vm199, %v1335, 0.0
    %1344 = vadd.xlane.f32.xlu0 %v1343
    %v1345 = vpop.xlane.xlu0 %1344
    %v1346 = vmul.f32 %v1342, %v657
    %v1347 = vmul.f32 %v1345, %v657
    %v1348 = vsub.f32 %v1334, %v1346
    %v1349 = vsub.f32 %v1335, %v1347
    %v1350 = vmul.f32 %v1348, %v1348
    %v1351 = vmul.f32 %v1349, %v1349
    %v1352 = vsel %vm199, %v1350, 0.0
    %1353 = vadd.xlane.f32.xlu0 %v1352
    %v1354 = vpop.xlane.xlu0 %1353
    %v1355 = vsel %vm199, %v1351, 0.0
    %1356 = vadd.xlane.f32.xlu0 %v1355
    %v1357 = vpop.xlane.xlu0 %1356
    %v1358 = vmul.f32 %v1354, %v657
    %v1359 = vmul.f32 %v1357, %v657
    %v1360 = vadd.f32 %v1358, 1e-05
    %v1361 = vadd.f32 %v1359, 1e-05
    %v1362 = vrsqrt.pop %v1360
    %v1363 = vrsqrt.pop %v1361
    %v1364 = vmul.f32 %v1348, %v1362
    %v1365 = vmul.f32 %v1349, %v1363
    %v1367 = vlaneseq
    %v1368 = vshrl.u32 %v1367, 7
    %v1369 = vsub.s32 0, %v1368
    %v1370 = vrot.slane %v1337, %v1369
    %v1372 = vmul.f32 %v1364, %v1370
    %v1373 = vmul.f32 %v1365, %v1370
    %v1375 = vlaneseq
    %v1376 = vshrl.u32 %v1375, 7
    %v1377 = vsub.s32 0, %v1376
    %v1378 = vrot.slane %v1339, %v1377
    %v1380 = vadd.f32 %v1372, %v1378
    %v1381 = vadd.f32 %v1373, %v1378
    %v1382 = vpack.c.bf16 %v1381, %v1380
    %s1383 = scalar_lea.vmem [#allocation10], 16
    %v1384 = vld [vmem:[%s1383] sm:$0xf]
    %v1385 = vld [vmem:[%s1383 + $0x4] sm:$0xf]
    %v1386 = vld [vmem:[%s1383 + $0x8] sm:$0xf]
    %v1387 = vld [vmem:[%s1383 + $0xc] sm:$0xf]
    %s1388 = scalar_lea.vmem [#allocation11], 1
    %v1389 = vld [vmem:[%s1388] sm:$0x1]
    %v1391 = vlaneseq
    %v1392 = vshrl.u32 %v1391, 7
    %v1393 = vsub.s32 0, %v1392
    %v1394 = vrot.slane %v1389, %v1393
    %v1400 = vunpack.c.l.b16 %v1384
    %v1401 = vunpack.c.l.b16 %v1385
    %v1402 = vunpack.c.l.b16 %v1386
    %v1403 = vunpack.c.l.b16 %v1387
    %v1404 = vpack.c.b16 %v1401, %v1400
    %v1405 = vpack.c.b16 %v1403, %v1402
    %v1409 = vsel %vm199, %v1382, 0
    %1411 = vmatprep.subr.bf16.mxu0 0
    %1412 = vmatpush1.bf16.msra.mxu0 %v1404
    %1413 = vmatprep.subr.bf16.mxu0 0
    %1414 = vmatpush1.bf16.msra.mxu0 %v1405
    %1415 = vmatprep.subr.bf16.mxu0 0
    %1416 = vmatpush1.bf16.msra.mxu0 0
    %1417 = vmatprep.subr.bf16.mxu0 0
    %1418 = vmatpush1.bf16.msra.mxu0 0
    %1419 = vmatprep.subr.bf16.mxu0 0
    %1420 = vmatpush1.bf16.msra.mxu0 0
    %1421 = vmatprep.subr.bf16.mxu0 0
    %1422 = vmatpush1.bf16.msra.mxu0 0
    %1423 = vmatprep.subr.bf16.mxu0 0
    %1424 = vmatpush1.bf16.msra.mxu0 0
    %1425 = vmatprep.subr.bf16.mxu0 0
    %1426 = vmatpush1.bf16.msra.mxu0 0
    %1427 = vmatprep.subr.bf16.mxu0 0
    %1428 = vmatpush1.bf16.msra.mxu0 0
    %1429 = vmatprep.subr.bf16.mxu0 0
    %1430 = vmatpush1.bf16.msra.mxu0 0
    %1431 = vmatprep.subr.bf16.mxu0 0
    %1432 = vmatpush1.bf16.msra.mxu0 0
    %1433 = vmatprep.subr.bf16.mxu0 0
    %1434 = vmatpush1.bf16.msra.mxu0 0
    %1435 = vmatprep.subr.bf16.mxu0 0
    %1436 = vmatpush1.bf16.msra.mxu0 0
    %1437 = vmatprep.subr.bf16.mxu0 0
    %1438 = vmatpush1.bf16.msra.mxu0 0
    %1439 = vmatprep.subr.bf16.mxu0 0
    %1440 = vmatpush1.bf16.msra.mxu0 0
    %1441 = vmatprep.subr.bf16.mxu0 0
    %1442 = vmatpush1.bf16.msra.mxu0 0
    %1443 = vmatprep.mubr.bf16.mxu0 0
    %1444 = vmatmul.mubr.bf16.gmra.mrb[0].mxu0 %v1409
    %v1445 = vpop.f32.mrb[0].mxu0
    %v1446 = vadd.f32 %v1394, %v1445
    %v1447 = vpop.f32.mrb[0].mxu0
    %v1448 = vpop.f32.mrb[0].mxu0
    %v1449 = vadd.f32 %v1394, %v1448
    %v1450 = vpop.f32.mrb[0].mxu0
    %1451 = vdwg.mxu0
    %v1452 = vmax.f32 %v1446, 0.0
    %v1453 = vmax.f32 %v1449, 0.0
    %v1454 = vpack.c.bf16 %v1453, %v1452
    %s1455 = scalar_lea.vmem %s9, 32
    %v1456 = vld [vmem:[%s1455] sm:$0xf]
    %v1457 = vld [vmem:[%s1455 + $0x4] sm:$0xf]
    %v1458 = vld [vmem:[%s1455 + $0x8] sm:$0xf]
    %v1459 = vld [vmem:[%s1455 + $0xc] sm:$0xf]
    %v1460 = vld [vmem:[%s1455 + $0x10] sm:$0xf]
    %v1461 = vld [vmem:[%s1455 + $0x14] sm:$0xf]
    %v1462 = vld [vmem:[%s1455 + $0x18] sm:$0xf]
    %v1463 = vld [vmem:[%s1455 + $0x1c] sm:$0xf]
    %s1464 = scalar_lea.vmem [#allocation13], 1
    %v1465 = vld [vmem:[%s1464] sm:$0x1]
    %v1467 = vlaneseq
    %v1468 = vshrl.u32 %v1467, 7
    %v1469 = vsub.s32 0, %v1468
    %v1470 = vrot.slane %v1465, %v1469
    %v1480 = vunpack.c.l.b16 %v1456
    %v1481 = vunpack.c.l.b16 %v1457
    %v1482 = vunpack.c.l.b16 %v1458
    %v1483 = vunpack.c.l.b16 %v1459
    %v1484 = vunpack.c.l.b16 %v1460
    %v1485 = vunpack.c.l.b16 %v1461
    %v1486 = vunpack.c.l.b16 %v1462
    %v1487 = vunpack.c.l.b16 %v1463
    %v1488 = vpack.c.b16 %v1481, %v1480
    %v1489 = vpack.c.b16 %v1483, %v1482
    %v1490 = vpack.c.b16 %v1485, %v1484
    %v1491 = vpack.c.b16 %v1487, %v1486
    %v1497 = vsel %vm804, %v1454, 0
    %1499 = vmatprep.subr.bf16.mxu0 0
    %1500 = vmatpush1.bf16.msra.mxu0 %v1488
    %1501 = vmatprep.subr.bf16.mxu0 0
    %1502 = vmatpush1.bf16.msra.mxu0 %v1489
    %1503 = vmatprep.subr.bf16.mxu0 0
    %1504 = vmatpush1.bf16.msra.mxu0 %v1490
    %1505 = vmatprep.subr.bf16.mxu0 0
    %1506 = vmatpush1.bf16.msra.mxu0 %v1491
    %1507 = vmatprep.subr.bf16.mxu0 0
    %1508 = vmatpush1.bf16.msra.mxu0 0
    %1509 = vmatprep.subr.bf16.mxu0 0
    %1510 = vmatpush1.bf16.msra.mxu0 0
    %1511 = vmatprep.subr.bf16.mxu0 0
    %1512 = vmatpush1.bf16.msra.mxu0 0
    %1513 = vmatprep.subr.bf16.mxu0 0
    %1514 = vmatpush1.bf16.msra.mxu0 0
    %1515 = vmatprep.subr.bf16.mxu0 0
    %1516 = vmatpush1.bf16.msra.mxu0 0
    %1517 = vmatprep.subr.bf16.mxu0 0
    %1518 = vmatpush1.bf16.msra.mxu0 0
    %1519 = vmatprep.subr.bf16.mxu0 0
    %1520 = vmatpush1.bf16.msra.mxu0 0
    %1521 = vmatprep.subr.bf16.mxu0 0
    %1522 = vmatpush1.bf16.msra.mxu0 0
    %1523 = vmatprep.subr.bf16.mxu0 0
    %1524 = vmatpush1.bf16.msra.mxu0 0
    %1525 = vmatprep.subr.bf16.mxu0 0
    %1526 = vmatpush1.bf16.msra.mxu0 0
    %1527 = vmatprep.subr.bf16.mxu0 0
    %1528 = vmatpush1.bf16.msra.mxu0 0
    %1529 = vmatprep.subr.bf16.mxu0 0
    %1530 = vmatpush1.bf16.msra.mxu0 0
    %1531 = vmatprep.mubr.bf16.mxu0 0
    %1532 = vmatmul.mubr.bf16.gmra.mrb[0].mxu0 %v1497
    %v1533 = vpop.f32.mrb[0].mxu0
    %v1534 = vadd.f32 %v1470, %v1533
    %v1535 = vpop.f32.mrb[0].mxu0
    %v1536 = vpop.f32.mrb[0].mxu0
    %v1537 = vadd.f32 %v1470, %v1536
    %v1538 = vpop.f32.mrb[0].mxu0
    %1539 = vdwg.mxu0
    %v1540 = vadd.f32 %v1534, %v1380
    %v1541 = vadd.f32 %v1537, %v1381
    %s1542 = scalar_lea.vmem [#allocation14], 1
    %v1543 = vld [vmem:[%s1542] sm:$0x1]
    %s1544 = scalar_lea.vmem [#allocation16], 1
    %v1545 = vld [vmem:[%s1544] sm:$0x1]
    %v1546 = vsel %vm199, %v1540, 0.0
    %1547 = vadd.xlane.f32.xlu0 %v1546
    %v1548 = vpop.xlane.xlu0 %1547
    %v1549 = vsel %vm199, %v1541, 0.0
    %1550 = vadd.xlane.f32.xlu0 %v1549
    %v1551 = vpop.xlane.xlu0 %1550
    %v1552 = vmul.f32 %v1548, %v657
    %v1553 = vmul.f32 %v1551, %v657
    %v1554 = vsub.f32 %v1540, %v1552
    %v1555 = vsub.f32 %v1541, %v1553
    %v1556 = vmul.f32 %v1554, %v1554
    %v1557 = vmul.f32 %v1555, %v1555
    %v1558 = vsel %vm199, %v1556, 0.0
    %1559 = vadd.xlane.f32.xlu0 %v1558
    %v1560 = vpop.xlane.xlu0 %1559
    %v1561 = vsel %vm199, %v1557, 0.0
    %1562 = vadd.xlane.f32.xlu0 %v1561
    %v1563 = vpop.xlane.xlu0 %1562
    %v1564 = vmul.f32 %v1560, %v657
    %v1565 = vmul.f32 %v1563, %v657
    %v1566 = vadd.f32 %v1564, 1e-05
    %v1567 = vadd.f32 %v1565, 1e-05
    %v1568 = vrsqrt.pop %v1566
    %v1569 = vrsqrt.pop %v1567
    %v1570 = vmul.f32 %v1554, %v1568
    %v1571 = vmul.f32 %v1555, %v1569
    %v1573 = vlaneseq
    %v1574 = vshrl.u32 %v1573, 7
    %v1575 = vsub.s32 0, %v1574
    %v1576 = vrot.slane %v1543, %v1575
    %v1578 = vmul.f32 %v1570, %v1576
    %v1579 = vmul.f32 %v1571, %v1576
    %v1581 = vlaneseq
    %v1582 = vshrl.u32 %v1581, 7
    %v1583 = vsub.s32 0, %v1582
    %v1584 = vrot.slane %v1545, %v1583
    %v1586 = vadd.f32 %v1578, %v1584
    %v1587 = vadd.f32 %v1579, %v1584
    %v1588 = vsel %vm199, %v1586, 0.0
    %v1589 = vrot.slane %v1588, 4
    %v1590 = vadd.f32 %v1588, %v1589
    %v1591 = vrot.slane %v1590, 2
    %v1592 = vadd.f32 %v1590, %v1591
    %v1593 = vrot.slane %v1592, 1
    %v1594 = vadd.f32 %v1592, %v1593
    %v1595 = vsel %vm199, %v1587, 0.0
    %v1596 = vrot.slane %v1595, 4
    %v1597 = vadd.f32 %v1595, %v1596
    %v1598 = vrot.slane %v1597, 2
    %v1599 = vadd.f32 %v1597, %v1598
    %v1600 = vrot.slane %v1599, 1
    %v1601 = vadd.f32 %v1599, %v1600
    %v1602 = vrcp.pop 8.0
    %v1603 = vmul.f32 %v1594, %v1602
    %v1604 = vmul.f32 %v1601, %v1602
    %v1605 = vpack.c.bf16 %v1603, %v1603
    %v1606 = vpack.c.bf16 %v1604, %v1604
    %v1607 = vld [vmem:[%s13] sm:$0xf]
    %v1608 = vld [vmem:[%s13 + $0x4] sm:$0xf]
    %v1609 = vld [vmem:[%s13 + $0x8] sm:$0xf]
    %v1610 = vld [vmem:[%s13 + $0xc] sm:$0xf]
    %v1611 = vld [vmem:[%s14] sm:$0x1]
    %v1613 = vlaneseq
    %v1614 = vshrl.u32 %v1613, 7
    %v1615 = vsub.s32 0, %v1614
    %v1616 = vrot.slane %v1611, %v1615
    %v1620 = vunpack.c.l.b16 %v1605
    %v1621 = vunpack.c.l.b16 %v1606
    %vm1622 = vcmask 1041409
    %v1623 = vsel %vm1622, %v1621, %v1620
    %v1624 = vpack.c.b16 %v1623, %v1623
    %v1629 = vunpack.c.l.b16 %v1607
    %v1630 = vunpack.c.l.b16 %v1608
    %v1631 = vunpack.c.l.b16 %v1609
    %v1632 = vunpack.c.l.b16 %v1610
    %v1633 = vpack.c.b16 %v1630, %v1629
    %v1634 = vpack.c.b16 %v1632, %v1631
    %v1638 = vsel %vm199, %v1624, 0
    %1640 = vmatprep.subr.bf16.mxu0 0
    %1641 = vmatpush1.bf16.msra.mxu0 %v1633
    %1642 = vmatprep.subr.bf16.mxu0 0
    %1643 = vmatpush1.bf16.msra.mxu0 %v1634
    %1644 = vmatprep.subr.bf16.mxu0 0
    %1645 = vmatpush1.bf16.msra.mxu0 0
    %1646 = vmatprep.subr.bf16.mxu0 0
    %1647 = vmatpush1.bf16.msra.mxu0 0
    %1648 = vmatprep.subr.bf16.mxu0 0
    %1649 = vmatpush1.bf16.msra.mxu0 0
    %1650 = vmatprep.subr.bf16.mxu0 0
    %1651 = vmatpush1.bf16.msra.mxu0 0
    %1652 = vmatprep.subr.bf16.mxu0 0
    %1653 = vmatpush1.bf16.msra.mxu0 0
    %1654 = vmatprep.subr.bf16.mxu0 0
    %1655 = vmatpush1.bf16.msra.mxu0 0
    %1656 = vmatprep.subr.bf16.mxu0 0
    %1657 = vmatpush1.bf16.msra.mxu0 0
    %1658 = vmatprep.subr.bf16.mxu0 0
    %1659 = vmatpush1.bf16.msra.mxu0 0
    %1660 = vmatprep.subr.bf16.mxu0 0
    %1661 = vmatpush1.bf16.msra.mxu0 0
    %1662 = vmatprep.subr.bf16.mxu0 0
    %1663 = vmatpush1.bf16.msra.mxu0 0
    %1664 = vmatprep.subr.bf16.mxu0 0
    %1665 = vmatpush1.bf16.msra.mxu0 0
    %1666 = vmatprep.subr.bf16.mxu0 0
    %1667 = vmatpush1.bf16.msra.mxu0 0
    %1668 = vmatprep.subr.bf16.mxu0 0
    %1669 = vmatpush1.bf16.msra.mxu0 0
    %1670 = vmatprep.subr.bf16.mxu0 0
    %1671 = vmatpush1.bf16.msra.mxu0 0
    %1672 = vmatprep.mubr.bf16.mxu0 0
    %1673 = vmatmul.mubr.bf16.gmra.mrb[0].mxu0 %v1638
    %v1674 = vpop.f32.mrb[0].mxu0
    %v1675 = vadd.f32 %v1616, %v1674
    %v1676 = vpop.f32.mrb[0].mxu0
    %v1677 = vpop.f32.mrb[0].mxu0
    %v1678 = vpop.f32.mrb[0].mxu0
    %1679 = vdwg.mxu0
    %vm1680 = vcmask 1041408
    %v1681 = vsel %vm1680, %v1675, -inf
    %1682 = vmax.xlane.f32.xlu0 %v1681
    %v1683 = vpop.xlane.xlu0 %1682
    %v1684 = vsub.f32 %v1675, %v1683
    %v1685 = vmul.f32 %v1684, 1.442695
    %v1686 = vpow.pop %v1685
    %v1687 = vsel %vm1680, %v1686, 0.0
    %1688 = vadd.xlane.f32.xlu0 %v1687
    %v1689 = vpop.xlane.xlu0 %1688
    %v1690 = vlog2.pop %v1689
    %v1691 = vmul.f32 %v1690, 0.6931472
    %v1692 = vsub.f32 %v1684, %v1691
    %1693 = vst [vmem:[#allocation17] sm:$0x3] %v1692
    // Predicated region
    $region98: #{tpu_custom_call.1} parent=1 // pred_check
      _
    $region99: #{tpu_custom_call.1} parent=1 // pred_check_branch
      %1695 = sbr.rel (0) target = $region101
    $region100: #{tpu_custom_call.1} parent=1 // pred_region
      %s1697 = ssub.s32 32, 32
      %1698 = vsyncadd [#allocation4], %s1697
      %s1700 = sshll.u32 [#allocation17], 4
      %s1701 = int_to_ptr.vmem [resolvable:$true] %s1700
      %1703 = dma.vmem_to_hbm [thread:$0]  %s1701, 32, %s15, [#allocation4]
    $region101: #{tpu_custom_call.1} parent=1 // pred_fallthru
      _
    // Predicated region
    $region102: #{tpu_custom_call.1} parent=1 // pred_check
      _
    $region103: #{tpu_custom_call.1} parent=1 // pred_check_branch
      %1705 = sbr.rel (0) target = $region105
    $region104: #{tpu_custom_call.1} parent=1 // pred_region
      %1706 = dma.done [#allocation4], 32
    $region105: #{tpu_custom_call.1} parent=1 // pred_fallthru
      _
    %1707 = vsyncpa [#allocation3], 1
    %1708 = vsyncpa [#allocation6], 1
    %1709 = vsyncpa [#allocation9], 1
    %1710 = vsyncpa [#allocation12], 1
    %1711 = vsyncpa [#allocation15], 1
    %1712 = vsyncpa [#allocation4], 1

</llo_original>
